<compile_context>
chip_gen: v7x
topology: tpu7x:2x2x1
jax: 0.10.0
libtpu: 0.0.40
codegen_flags: <defaults>
</compile_context>

<pallas_src>
import functools

import jax
import jax.numpy as jnp
from jax import lax
from jax.experimental import pallas as pl
from jax.experimental.pallas import tpu as pltpu

_VMEM_LIMIT = 32 * 1024 * 1024          # fits v5e/v6e/v7x scoped budgets
_BN_EPS = 1e-5


def _round_up(x, m):
    return (x + m - 1) // m * m


def _pick_tm(M, cap=512):
    """M tile <= cap, multiple of 8, chosen to minimize padding. Returns (tm, M_pad)."""
    n = -(-M // cap)
    tm = _round_up(-(-M // n), 8)
    return tm, tm * n


# ----------------------------------------------------------------------------------
# Pallas kernels
# ----------------------------------------------------------------------------------
def _make_conv_kernel(relu, has_res):
    """Matmul-over-taps + BN(+residual)(+ReLU) epilogue.
    a: (T, tm, Kb) bf16, w: (T, Kb, tn) bf16, s/c: (1, tn) f32,
    [r: (tm, tn) bf16], o: (tm, tn) bf16."""

    def kernel(a_ref, w_ref, s_ref, c_ref, *rest):
        if has_res:
            r_ref, o_ref = rest
        else:
            (o_ref,) = rest
        acc = jnp.dot(a_ref[0], w_ref[0], preferred_element_type=jnp.float32)
        for t in range(1, a_ref.shape[0]):              # static unroll over taps
            acc = acc + jnp.dot(a_ref[t], w_ref[t],
                                preferred_element_type=jnp.float32)
        y = acc * s_ref[0] + c_ref[0]                    # f32 epilogue
        if has_res:
            y = y + r_ref[...].astype(jnp.float32)
        if relu:
            y = jnp.maximum(y, 0.0)
        o_ref[...] = y.astype(o_ref.dtype)

    return kernel


def _make_grouped_s1_kernel(Wp, Mo, relu):
    """Grouped 3x3 stride-1 conv for one image x one 128-lane group block.
    x: (1, Hp*Wp, 128) flattened padded activation (read from HBM exactly once),
    w: (9, 128, 128) block-diagonal per-tap weights, s/c: (1, 128) f32,
    o: (1, Ho*Wp, 128).  The 9 taps are offset slices along the flat axis; outputs at
    flat position q = h*Wp + w are valid for w < Wo (the rest is discarded outside)."""

    def kernel(x_ref, w_ref, s_ref, c_ref, o_ref):
        acc = jnp.dot(x_ref[0, pl.ds(0, Mo), :], w_ref[0],
                      preferred_element_type=jnp.float32)
        for t in range(1, 9):                            # static unroll over taps
            dy, dx = divmod(t, 3)
            acc = acc + jnp.dot(x_ref[0, pl.ds(dy * Wp + dx, Mo), :], w_ref[t],
                                preferred_element_type=jnp.float32)
        y = acc * s_ref[0] + c_ref[0]
        if relu:
            y = jnp.maximum(y, 0.0)
        o_ref[0, pl.ds(0, Mo), :] = y.astype(o_ref.dtype)

    return kernel


def _maxpool_kernel(x_ref, o_ref):
    # x: (9, tm, 128) stacked 3x3 taps (lane-folded) -> o: (tm, 128)
    o_ref[...] = jnp.max(x_ref[...], axis=0)


def _head_kernel(x_ref, w_ref, b_ref, o_ref):
    # Fused global average pool + Linear(2048 -> 1).
    feats = jnp.mean(x_ref[...].astype(jnp.float32), axis=1)          # (N, C)
    o_ref[...] = jnp.dot(feats, w_ref[...].astype(jnp.float32),
                         preferred_element_type=jnp.float32) + b_ref[...]


# ----------------------------------------------------------------------------------
# Tiled matmul dispatcher (dense convs + the 3 stride-2 grouped convs)
# ----------------------------------------------------------------------------------
def _conv_matmul(a, wmat, scale, bias, res, relu, lane_sync, tm):
    """a: (T, M_pad, KA) bf16, wmat: (T, Kb, Cout) bf16, scale/bias: (1, Cout) f32,
    res: None or (M_pad, Cout) bf16.  Returns (M_pad, Cout) bf16.

    lane_sync=True (grouped conv): the lane (K) axis of `a` is tiled in lock-step with
    the 128-wide Cout tile (KA = GB*128, Kb = tn = 128, block-diagonal weights).

    The grid loop order is chosen per layer so that the larger operand stays
    VMEM-resident across the inner sweep (weights resident for the deep layers)."""
    T, M_pad, KA = a.shape
    Kb, Cout = wmat.shape[1], wmat.shape[2]

    if lane_sync:
        tn = 128
    else:
        tn = 256 if (Cout > 256 and Cout % 256 == 0) else Cout
    n_m, n_n = M_pad // tm, Cout // tn

    # loop-order choice: HBM traffic for each ordering (blocks re-fetched on index change)
    a_bytes = a.size * a.dtype.itemsize
    w_bytes = wmat.size * wmat.dtype.itemsize
    a_cost_n_outer = a_bytes if lane_sync else a_bytes * n_n
    m_outer = (a_bytes + w_bytes * n_m) <= (w_bytes + a_cost_n_outer)

    if m_outer:
        grid = (n_m, n_n)
        sel = lambda g0, g1: (g0, g1)          # -> (m_idx, n_idx)
    else:
        grid = (n_n, n_m)
        sel = lambda g0, g1: (g1, g0)

    if lane_sync:
        a_bs = (T, tm, 128)
        a_map = lambda g0, g1: (0, sel(g0, g1)[0], sel(g0, g1)[1])
    else:
        a_bs = (T, tm, KA)
        a_map = lambda g0, g1: (0, sel(g0, g1)[0], 0)
    w_map = lambda g0, g1: (0, 0, sel(g0, g1)[1])
    v_map = lambda g0, g1: (0, sel(g0, g1)[1])
    o_map = lambda g0, g1: (sel(g0, g1)[0], sel(g0, g1)[1])

    w_spec = pl.BlockSpec((T, Kb, tn), w_map)
    if (not lane_sync) and m_outer and n_n > 1 and w_bytes >= (2 << 20):
        # big weight panels that are streamed per step: deeper buffering hides DMA (v5e)
        w_spec = pl.BlockSpec((T, Kb, tn), w_map, pipeline_mode=pl.Buffered(3))

    in_specs = [
        pl.BlockSpec(a_bs, a_map),
        w_spec,
        pl.BlockSpec((1, tn), v_map),
        pl.BlockSpec((1, tn), v_map),
    ]
    args = [a, wmat, scale, bias]
    if res is not None:
        in_specs.append(pl.BlockSpec((tm, tn), o_map))
        args.append(res)

    return pl.pallas_call(
        _make_conv_kernel(relu, res is not None),
        out_shape=jax.ShapeDtypeStruct((M_pad, Cout), jnp.bfloat16),
        grid=grid,
        in_specs=in_specs,
        out_specs=pl.BlockSpec((tm, tn), o_map),
        compiler_params=pltpu.CompilerParams(
            dimension_semantics=("parallel", "parallel"),
            vmem_limit_bytes=_VMEM_LIMIT),
    )(*args)


# ----------------------------------------------------------------------------------
# Conv wrappers (take kernel-ready prepped weights)
# ----------------------------------------------------------------------------------
@functools.partial(jax.jit, static_argnames=("stride", "padding", "kh", "kw", "relu"))
def dense_conv_bn(x, wmat, scale, bias, res=None, *,
                  stride=1, padding=0, kh=1, kw=1, relu=True):
    """Dense (groups=1) conv + fused eval-BN (+residual)(+ReLU).  x: NHWC bf16.
    wmat: (1, K_pad, Cout) prepped bf16 weights with taps folded into K."""
    N, H, W, Cin = x.shape
    K_pad, Cout = wmat.shape[1], wmat.shape[2]
    Ho = (H + 2 * padding - kh) // stride + 1
    Wo = (W + 2 * padding - kw) // stride + 1
    M = N * Ho * Wo

    if kh == 1 and kw == 1 and stride == 1 and padding == 0:
        a = x.reshape(1, M, Cin)                                   # pure bitcast
    else:
        xp = jnp.pad(x, ((0, 0), (padding,) * 2, (padding,) * 2, (0, 0))) if padding else x
        taps = [xp[:, dy:dy + stride * Ho:stride, dx:dx + stride * Wo:stride, :]
                for dy in range(kh) for dx in range(kw)]           # dy major, dx minor
        a = jnp.concatenate(taps, axis=-1).reshape(1, M, kh * kw * Cin)
    a = a.astype(jnp.bfloat16)
    if a.shape[2] != K_pad:                                        # stem: K=147 -> 152
        a = jnp.pad(a, ((0, 0), (0, 0), (0, K_pad - a.shape[2])))

    tm, M_pad = _pick_tm(M)
    if M_pad != M:
        a = jnp.pad(a, ((0, 0), (0, M_pad - M), (0, 0)))

    r = None
    if res is not None:
        assert res.shape == (N, Ho, Wo, Cout)
        r = res.reshape(M, Cout).astype(jnp.bfloat16)
        if M_pad != M:
            r = jnp.pad(r, ((0, M_pad - M), (0, 0)))

    out = _conv_matmul(a, wmat, scale, bias, r, relu, False, tm)   # (M_pad, Cout) bf16
    return out[:M].reshape(N, Ho, Wo, Cout)


@functools.partial(jax.jit, static_argnames=("relu",))
def grouped_conv3x3_s1(x, wmat, scale, bias, *, relu=True):
    """Grouped (32-group) 3x3 stride-1 pad-1 conv + BN + ReLU with block-diagonal
    128-lane group-block weights.  No 9x im2col: each 128-channel slab of the padded
    activation is read from HBM once and the taps are offset slices in-kernel."""
    N, H, W, Cin = x.shape
    Cout = wmat.shape[2]
    assert Cin == Cout and Cout % 128 == 0
    Hp, Wp = H + 2, W + 2
    Ho, Wo = H, W
    Mo = (Ho - 1) * Wp + Wo            # last valid flat output position + 1
    HoWp = Ho * Wp
    GB = Cout // 128

    xflat = jnp.pad(x, ((0, 0), (1, 1), (1, 1), (0, 0))).astype(jnp.bfloat16)
    xflat = xflat.reshape(N, Hp * Wp, Cin)                         # contiguous bitcast

    out = pl.pallas_call(
        _make_grouped_s1_kernel(Wp, Mo, relu),
        out_shape=jax.ShapeDtypeStruct((N, HoWp, Cout), jnp.bfloat16),
        grid=(N, GB),
        in_specs=[pl.BlockSpec((1, Hp * Wp, 128), lambda n, j: (n, 0, j)),
                  pl.BlockSpec((9, 128, 128), lambda n, j: (0, 0, j)),
                  pl.BlockSpec((1, 128), lambda n, j: (0, j)),
                  pl.BlockSpec((1, 128), lambda n, j: (0, j))],
        out_specs=pl.BlockSpec((1, HoWp, 128), lambda n, j: (n, 0, j)),
        compiler_params=pltpu.CompilerParams(
            dimension_semantics=("parallel", "parallel"),
            vmem_limit_bytes=_VMEM_LIMIT),
    )(xflat, wmat, scale, bias)
    # keep only flat positions h*Wp + w with w < Wo (one output-sized XLA copy)
    return out.reshape(N, Ho, Wp, Cout)[:, :, :Wo, :]


@functools.partial(jax.jit, static_argnames=("relu",))
def grouped_conv3x3_s2(x, wmat, scale, bias, *, relu=True):
    """Grouped 3x3 stride-2 pad-1 conv (first block of layers 2-4)."""
    # TODO(synk): still materializes the 9x tap stack in XLA; an in-kernel strided-tap
    # variant would remove this remaining HBM expansion (only 3 such convs).
    N, H, W, Cin = x.shape
    Cout = wmat.shape[2]
    Ho = (H + 2 - 3) // 2 + 1
    Wo = (W + 2 - 3) // 2 + 1
    M = N * Ho * Wo
    xp = jnp.pad(x, ((0, 0), (1, 1), (1, 1), (0, 0)))
    taps = [xp[:, dy:dy + 2 * Ho:2, dx:dx + 2 * Wo:2, :]
            for dy in range(3) for dx in range(3)]
    a = jnp.stack(taps, axis=0).reshape(9, M, Cin).astype(jnp.bfloat16)
    tm, M_pad = _pick_tm(M)
    if M_pad != M:
        a = jnp.pad(a, ((0, 0), (0, M_pad - M), (0, 0)))
    out = _conv_matmul(a, wmat, scale, bias, None, relu, True, tm)
    return out[:M].reshape(N, Ho, Wo, Cout)


@jax.jit
def maxpool_3x3_s2_p1(x):
    N, H, W, C = x.shape
    Ho, Wo = (H + 2 - 3) // 2 + 1, (W + 2 - 3) // 2 + 1
    xp = jnp.pad(x, ((0, 0), (1, 1), (1, 1), (0, 0)), constant_values=float("-inf"))
    M = N * Ho * Wo
    # TODO(synk): the 9x tap stack is still XLA glue; the pool itself is cheap vs convs.
    pats = jnp.stack(
        [xp[:, dy:dy + 2 * Ho:2, dx:dx + 2 * Wo:2, :]
         for dy in range(3) for dx in range(3)],
        axis=0).reshape(9, M, C)
    # lane-dense output: fold pairs of pixels so the last dim is 128 (unmasked stores)
    f = 1
    if C < 128 and 128 % C == 0 and M % (128 // C) == 0:
        f = 128 // C
    M2, C2 = M // f, C * f
    pats = pats.reshape(9, M2, C2)
    tm, M2_pad = _pick_tm(M2)
    if M2_pad != M2:
        pats = jnp.pad(pats, ((0, 0), (0, M2_pad - M2), (0, 0)),
                       constant_values=float("-inf"))
    out = pl.pallas_call(
        _maxpool_kernel,
        out_shape=jax.ShapeDtypeStruct((M2_pad, C2), x.dtype),
        grid=(M2_pad // tm,),
        in_specs=[pl.BlockSpec((9, tm, C2), lambda i: (0, i, 0))],
        out_specs=pl.BlockSpec((tm, C2), lambda i: (i, 0)),
        compiler_params=pltpu.CompilerParams(
            dimension_semantics=("parallel",),
            vmem_limit_bytes=_VMEM_LIMIT),
    )(pats)
    return out[:M2].reshape(N, Ho, Wo, C)


@jax.jit
def head_avgpool_fc(x, w, b):
    """Fused global average pool + Linear(2048 -> 1).  x: NHWC bf16, w: (1, C) bf16."""
    N, H, W, C = x.shape
    xf = x.reshape(N, H * W, C)
    wm = jnp.transpose(w).astype(jnp.bfloat16)            # (C, 1)
    bm = b.reshape(1, 1).astype(jnp.float32)
    # TODO(synk): add a grid over N if N*H*W*C ever grows past the scoped VMEM budget.
    return pl.pallas_call(
        _head_kernel,
        out_shape=jax.ShapeDtypeStruct((N, 1), jnp.float32),
        grid=(1,),
        in_specs=[pl.BlockSpec((N, H * W, C), lambda i: (0, 0, 0)),
                  pl.BlockSpec((C, 1), lambda i: (0, 0)),
                  pl.BlockSpec((1, 1), lambda i: (0, 0))],
        out_specs=pl.BlockSpec((N, 1), lambda i: (0, 0)),
        compiler_params=pltpu.CompilerParams(vmem_limit_bytes=_VMEM_LIMIT),
    )(xf, wm, bm)


# ----------------------------------------------------------------------------------
# One-time parameter preparation (hoisted out of the forward pass)
# ----------------------------------------------------------------------------------
def _prep_conv_bn(p, groups, kh, kw):
    """Raw {w, scale, bias} -> kernel-ready {wmat (bf16), scale/bias (1, Cout) f32}."""
    w = p["w"]
    Cout, Cin_g = w.shape[0], w.shape[1]
    wf = w.astype(jnp.bfloat16)
    if groups == 1:
        K = kh * kw * Cin_g
        wmat = wf.transpose(2, 3, 1, 0).reshape(1, K, Cout)        # (dy, dx, ci) folded
        Kp = _round_up(K, 8)
        if Kp != K:                                                # stem K=147 -> 152
            wmat = jnp.pad(wmat, ((0, 0), (0, Kp - K), (0, 0)))
    else:
        Cout_g = Cout // groups
        assert 128 % Cout_g == 0, "Cout_g must divide 128"
        gpb = 128 // Cout_g                   # groups per 128-lane block
        assert gpb * Cin_g == 128, "expects Cin_g == Cout_g (ResNeXt bottleneck)"
        GB = Cout // 128
        T = kh * kw
        wt = wf.reshape(groups, Cout_g, Cin_g, T).transpose(3, 0, 2, 1)
        wt = wt.reshape(T, GB, gpb, Cin_g, Cout_g)
        eye = jnp.eye(gpb, dtype=wf.dtype)
        bd = jnp.einsum('tbgic,gh->tbgihc', wt, eye)               # block-diag per block
        wmat = (bd.reshape(T, GB, 128, 128)
                  .transpose(0, 2, 1, 3)
                  .reshape(T, 128, Cout))
    return {"wmat": wmat,
            "scale": p["scale"].reshape(1, Cout).astype(jnp.float32),
            "bias": p["bias"].reshape(1, Cout).astype(jnp.float32)}


def prepare_params(params):
    prepped = {"conv1": _prep_conv_bn(params["conv1"], 1, 7, 7)}
    stages = []
    for stage in params["layers"]:
        blocks = []
        for blk in stage:
            b = {"conv1": _prep_conv_bn(blk["conv1"], 1, 1, 1),
                 "conv2": _prep_conv_bn(blk["conv2"], 32, 3, 3),
                 "conv3": _prep_conv_bn(blk["conv3"], 1, 1, 1)}
            if "downsample" in blk:
                b["downsample"] = _prep_conv_bn(blk["downsample"], 1, 1, 1)
            blocks.append(b)
        stages.append(blocks)
    prepped["layers"] = stages
    prepped["fc"] = {"w": params["fc"]["w"].astype(jnp.bfloat16),
                     "b": params["fc"]["b"].astype(jnp.float32)}
    return prepped


# ----------------------------------------------------------------------------------
# ResNeXt101_32x8d parameters (deterministic synthetic init) and forward pass
# ----------------------------------------------------------------------------------
def _init_conv_bn(key, cout, cin_g, kh, kw, gamma_scale=1.0):
    kw_, kg, kb, km, kv = jax.random.split(key, 5)
    fan_in = cin_g * kh * kw
    w = jax.random.normal(kw_, (cout, cin_g, kh, kw), jnp.float32) * jnp.sqrt(2.0 / fan_in)
    gamma = gamma_scale * (1.0 + 0.1 * jax.random.normal(kg, (cout,), jnp.float32))
    beta = 0.05 * jax.random.normal(kb, (cout,), jnp.float32)
    mean = 0.05 * jax.random.normal(km, (cout,), jnp.float32)
    var = 1.0 + 0.1 * jax.random.uniform(kv, (cout,), jnp.float32)
    scale = gamma / jnp.sqrt(var + _BN_EPS)
    bias = beta - mean * scale
    return {"w": w, "scale": scale, "bias": bias}


def init_resnext101_32x8d(key):
    groups, base_width, expansion = 32, 8, 4
    block_counts = [3, 4, 23, 3]
    planes_list = [64, 128, 256, 512]
    strides = [1, 2, 2, 2]
    keys = iter(jax.random.split(key, 256))

    params = {"conv1": _init_conv_bn(next(keys), 64, 3, 7, 7)}
    inplanes = 64
    stages = []
    for planes, nblocks, stride in zip(planes_list, block_counts, strides):
        width = int(planes * (base_width / 64.0)) * groups
        blocks = []
        for bi in range(nblocks):
            s = stride if bi == 0 else 1
            blk = {
                "conv1": _init_conv_bn(next(keys), width, inplanes, 1, 1),
                "conv2": _init_conv_bn(next(keys), width, width // groups, 3, 3),
                "conv3": _init_conv_bn(next(keys), planes * expansion, width, 1, 1,
                                       gamma_scale=0.2),
            }
            if s != 1 or inplanes != planes * expansion:
                blk["downsample"] = _init_conv_bn(next(keys), planes * expansion,
                                                  inplanes, 1, 1, gamma_scale=0.2)
            blocks.append(blk)
            inplanes = planes * expansion
        stages.append(blocks)
    params["layers"] = stages

    kfc1, kfc2 = jax.random.split(next(keys))
    params["fc"] = {
        "w": jax.random.normal(kfc1, (1, 512 * expansion), jnp.float32)
             / jnp.sqrt(512 * expansion),
        "b": 0.01 * jax.random.normal(kfc2, (1,), jnp.float32),
    }
    return params


def bottleneck_forward(x, blk, stride):
    p1, p2, p3 = blk["conv1"], blk["conv2"], blk["conv3"]
    out = dense_conv_bn(x, p1["wmat"], p1["scale"], p1["bias"],
                        stride=1, padding=0, kh=1, kw=1, relu=True)
    if stride == 1:
        out = grouped_conv3x3_s1(out, p2["wmat"], p2["scale"], p2["bias"], relu=True)
    else:
        out = grouped_conv3x3_s2(out, p2["wmat"], p2["scale"], p2["bias"], relu=True)
    if "downsample" in blk:
        pd = blk["downsample"]
        identity = dense_conv_bn(x, pd["wmat"], pd["scale"], pd["bias"],
                                 stride=stride, padding=0, kh=1, kw=1, relu=False)
    else:
        identity = x
    # conv3 + bn3 + residual add + relu fused in one Pallas kernel
    out = dense_conv_bn(out, p3["wmat"], p3["scale"], p3["bias"], identity,
                        stride=1, padding=0, kh=1, kw=1, relu=True)
    return out


def age_regression_forward(prepped, x_nchw):
    # Input NCHW (PyTorch convention) -> NHWC bf16 for all kernels; output (N, 1) f32.
    x = jnp.transpose(x_nchw, (0, 2, 3, 1)).astype(jnp.bfloat16)
    p = prepped["conv1"]
    x = dense_conv_bn(x, p["wmat"], p["scale"], p["bias"],
                      stride=2, padding=3, kh=7, kw=7, relu=True)
    x = maxpool_3x3_s2_p1(x)
    for stage, stride in zip(prepped["layers"], (1, 2, 2, 2)):
        for bi, blk in enumerate(stage):
            x = bottleneck_forward(x, blk, stride if bi == 0 else 1)
    return head_avgpool_fc(x, prepped["fc"]["w"], prepped["fc"]["b"])   # (N, 1)


# ----------------------------------------------------------------------------------
# References for unit checks (same bf16-cast inputs, f32 accumulation)
# ----------------------------------------------------------------------------------
def _ref_dense_1x1(x, p, res, relu):
    xr = x.astype(jnp.float32)
    wr = p["w"].astype(jnp.bfloat16).astype(jnp.float32)[:, :, 0, 0]   # (Cout, Cin)
    y = jnp.einsum('nhwc,oc->nhwo', xr, wr, precision=lax.Precision.HIGHEST)
    y = y * p["scale"] + p["bias"]
    if res is not None:
        y = y + res.astype(jnp.float32)
    if relu:
        y = jnp.maximum(y, 0.0)
    return y


def _ref_grouped_s1(x, p, groups):
    xr = x.astype(jnp.float32)
    wr = p["w"].astype(jnp.bfloat16).astype(jnp.float32).transpose(2, 3, 1, 0)  # HWIO
    y = lax.conv_general_dilated(
        xr, wr, window_strides=(1, 1), padding=((1, 1), (1, 1)),
        dimension_numbers=("NHWC", "HWIO", "NHWC"),
        feature_group_count=groups, precision=lax.Precision.HIGHEST)
    y = y * p["scale"] + p["bias"]
    return jnp.maximum(y, 0.0)


# ----------------------------------------------------------------------------------
if __name__ == "__main__":
    kp, kx = jax.random.split(jax.random.PRNGKey(0))

    # --- unit checks of the two conv kernel paths (bf16 operands on both sides) -------
    k1, k2, k3, k4 = jax.random.split(kp, 4)
    xg = jax.random.normal(k1, (2, 8, 8, 256), jnp.float32).astype(jnp.bfloat16)
    pg_raw = _init_conv_bn(k2, 256, 8, 3, 3)
    pg = _prep_conv_bn(pg_raw, 32, 3, 3)
    yg = grouped_conv3x3_s1(xg, pg["wmat"], pg["scale"], pg["bias"], relu=True)
    yg_ref = _ref_grouped_s1(xg, pg_raw, 32)
    assert bool(jnp.allclose(yg.astype(jnp.float32), yg_ref, rtol=2e-2, atol=2e-2)), \
        "grouped conv mismatch"

    xd = jax.random.normal(k3, (2, 4, 4, 64), jnp.float32).astype(jnp.bfloat16)
    pd_raw = _init_conv_bn(k4, 128, 64, 1, 1)
    pd = _prep_conv_bn(pd_raw, 1, 1, 1)
    rd = jax.random.normal(jax.random.PRNGKey(7), (2, 4, 4, 128),
                           jnp.float32).astype(jnp.bfloat16)
    yd = dense_conv_bn(xd, pd["wmat"], pd["scale"], pd["bias"], rd,
                       stride=1, padding=0, kh=1, kw=1, relu=True)
    yd_ref = _ref_dense_1x1(xd, pd_raw, rd, True)
    assert bool(jnp.allclose(yd.astype(jnp.float32), yd_ref, rtol=2e-2, atol=2e-2)), \
        "dense conv mismatch"

    # --- full AgeRegressionModel forward -----------------------------------------------
    # TODO(synk): pretrained ImageNet weights are not loadable here; parameters are
    # deterministic synthetic initializations with the exact module shapes.
    params = init_resnext101_32x8d(kp)
    prepped = prepare_params(params)              # one-time weight prep (not per-call)
    x = jax.random.normal(kx, (2, 3, 64, 64), jnp.float32)
    y = age_regression_forward(prepped, x)
    y = jax.block_until_ready(y)
    assert y.shape == (2, 1)
    assert bool(jnp.all(jnp.isfinite(y)))
    print("KERNEL_OK")
</pallas_src>

<mosaic_0001>
module attributes {stable_mosaic.version = 11 : i64} {
  func.func @kernel(%arg0: i32, %arg1: i32, %arg2: memref<1x100x128xbf16, #tpu.memory_space<vmem>>, %arg3: memref<9x128x128xbf16, #tpu.memory_space<vmem>>, %arg4: memref<1x128xf32, #tpu.memory_space<vmem>>, %arg5: memref<1x128xf32, #tpu.memory_space<vmem>>, %arg6: memref<1x80x128xbf16, #tpu.memory_space<vmem>>) attributes {dimension_semantics = [#tpu.dimension_semantics<parallel>, #tpu.dimension_semantics<parallel>], iteration_bounds = array<i64: 2, 2>, scalar_prefetch = 0 : i64, scratch_operands = 0 : i64, tpu.core_type = #tpu.core_type<tc>, window_params = [{transform_indices = @transform_0, window_bounds = array<i64: 1, 100, 128>}, {transform_indices = @transform_1, window_bounds = array<i64: 9, 128, 128>}, {transform_indices = @transform_2, window_bounds = array<i64: 1, 128>}, {transform_indices = @transform_3, window_bounds = array<i64: 1, 128>}, {transform_indices = @transform_4, window_bounds = array<i64: 1, 80, 128>}]} {
    %c0 = arith.constant 0 : index
    %c0_0 = arith.constant 0 : index
    %c0_1 = arith.constant 0 : index
    %0 = vector.load %arg2[%c0, %c0_0, %c0_1] : memref<1x100x128xbf16, #tpu.memory_space<vmem>>, vector<1x78x128xbf16>
    %1 = vector.shape_cast %0 : vector<1x78x128xbf16> to vector<78x128xbf16>
    %c0_2 = arith.constant 0 : index
    %c0_3 = arith.constant 0 : index
    %c0_4 = arith.constant 0 : index
    %2 = vector.load %arg3[%c0_2, %c0_3, %c0_4] : memref<9x128x128xbf16, #tpu.memory_space<vmem>>, vector<1x128x128xbf16>
    %3 = vector.shape_cast %2 : vector<1x128x128xbf16> to vector<128x128xbf16>
    %cst = arith.constant dense<0.000000e+00> : vector<78x128xf32>
    %4 = tpu.matmul %1, %3, %cst {dimension_numbers = #tpu.dot_dimension_numbers<[1], [0], [0], [1], [0, 0, 1, 1], [], []>} : vector<78x128xbf16>, vector<128x128xbf16>, vector<78x128xf32> -> vector<78x128xf32>
    %c0_5 = arith.constant 0 : index
    %c1 = arith.constant 1 : index
    %c0_6 = arith.constant 0 : index
    %5 = vector.load %arg2[%c0_5, %c1, %c0_6] : memref<1x100x128xbf16, #tpu.memory_space<vmem>>, vector<1x78x128xbf16>
    %6 = vector.shape_cast %5 : vector<1x78x128xbf16> to vector<78x128xbf16>
    %c1_7 = arith.constant 1 : index
    %c0_8 = arith.constant 0 : index
    %c0_9 = arith.constant 0 : index
    %7 = vector.load %arg3[%c1_7, %c0_8, %c0_9] : memref<9x128x128xbf16, #tpu.memory_space<vmem>>, vector<1x128x128xbf16>
    %8 = vector.shape_cast %7 : vector<1x128x128xbf16> to vector<128x128xbf16>
    %cst_10 = arith.constant dense<0.000000e+00> : vector<78x128xf32>
    %9 = tpu.matmul %6, %8, %cst_10 {dimension_numbers = #tpu.dot_dimension_numbers<[1], [0], [0], [1], [0, 0, 1, 1], [], []>} : vector<78x128xbf16>, vector<128x128xbf16>, vector<78x128xf32> -> vector<78x128xf32>
    %10 = arith.addf %4, %9 : vector<78x128xf32>
    %c0_11 = arith.constant 0 : index
    %c2 = arith.constant 2 : index
    %c0_12 = arith.constant 0 : index
    %11 = vector.load %arg2[%c0_11, %c2, %c0_12] : memref<1x100x128xbf16, #tpu.memory_space<vmem>>, vector<1x78x128xbf16>
    %12 = vector.shape_cast %11 : vector<1x78x128xbf16> to vector<78x128xbf16>
    %c2_13 = arith.constant 2 : index
    %c0_14 = arith.constant 0 : index
    %c0_15 = arith.constant 0 : index
    %13 = vector.load %arg3[%c2_13, %c0_14, %c0_15] : memref<9x128x128xbf16, #tpu.memory_space<vmem>>, vector<1x128x128xbf16>
    %14 = vector.shape_cast %13 : vector<1x128x128xbf16> to vector<128x128xbf16>
    %cst_16 = arith.constant dense<0.000000e+00> : vector<78x128xf32>
    %15 = tpu.matmul %12, %14, %cst_16 {dimension_numbers = #tpu.dot_dimension_numbers<[1], [0], [0], [1], [0, 0, 1, 1], [], []>} : vector<78x128xbf16>, vector<128x128xbf16>, vector<78x128xf32> -> vector<78x128xf32>
    %16 = arith.addf %10, %15 : vector<78x128xf32>
    %c0_17 = arith.constant 0 : index
    %c10 = arith.constant 10 : index
    %c0_18 = arith.constant 0 : index
    %17 = vector.load %arg2[%c0_17, %c10, %c0_18] : memref<1x100x128xbf16, #tpu.memory_space<vmem>>, vector<1x78x128xbf16>
    %18 = vector.shape_cast %17 : vector<1x78x128xbf16> to vector<78x128xbf16>
    %c3 = arith.constant 3 : index
    %c0_19 = arith.constant 0 : index
    %c0_20 = arith.constant 0 : index
    %19 = vector.load %arg3[%c3, %c0_19, %c0_20] : memref<9x128x128xbf16, #tpu.memory_space<vmem>>, vector<1x128x128xbf16>
    %20 = vector.shape_cast %19 : vector<1x128x128xbf16> to vector<128x128xbf16>
    %cst_21 = arith.constant dense<0.000000e+00> : vector<78x128xf32>
    %21 = tpu.matmul %18, %20, %cst_21 {dimension_numbers = #tpu.dot_dimension_numbers<[1], [0], [0], [1], [0, 0, 1, 1], [], []>} : vector<78x128xbf16>, vector<128x128xbf16>, vector<78x128xf32> -> vector<78x128xf32>
    %22 = arith.addf %16, %21 : vector<78x128xf32>
    %c0_22 = arith.constant 0 : index
    %c11 = arith.constant 11 : index
    %c0_23 = arith.constant 0 : index
    %23 = vector.load %arg2[%c0_22, %c11, %c0_23] : memref<1x100x128xbf16, #tpu.memory_space<vmem>>, vector<1x78x128xbf16>
    %24 = vector.shape_cast %23 : vector<1x78x128xbf16> to vector<78x128xbf16>
    %c4 = arith.constant 4 : index
    %c0_24 = arith.constant 0 : index
    %c0_25 = arith.constant 0 : index
    %25 = vector.load %arg3[%c4, %c0_24, %c0_25] : memref<9x128x128xbf16, #tpu.memory_space<vmem>>, vector<1x128x128xbf16>
    %26 = vector.shape_cast %25 : vector<1x128x128xbf16> to vector<128x128xbf16>
    %cst_26 = arith.constant dense<0.000000e+00> : vector<78x128xf32>
    %27 = tpu.matmul %24, %26, %cst_26 {dimension_numbers = #tpu.dot_dimension_numbers<[1], [0], [0], [1], [0, 0, 1, 1], [], []>} : vector<78x128xbf16>, vector<128x128xbf16>, vector<78x128xf32> -> vector<78x128xf32>
    %28 = arith.addf %22, %27 : vector<78x128xf32>
    %c0_27 = arith.constant 0 : index
    %c12 = arith.constant 12 : index
    %c0_28 = arith.constant 0 : index
    %29 = vector.load %arg2[%c0_27, %c12, %c0_28] : memref<1x100x128xbf16, #tpu.memory_space<vmem>>, vector<1x78x128xbf16>
    %30 = vector.shape_cast %29 : vector<1x78x128xbf16> to vector<78x128xbf16>
    %c5 = arith.constant 5 : index
    %c0_29 = arith.constant 0 : index
    %c0_30 = arith.constant 0 : index
    %31 = vector.load %arg3[%c5, %c0_29, %c0_30] : memref<9x128x128xbf16, #tpu.memory_space<vmem>>, vector<1x128x128xbf16>
    %32 = vector.shape_cast %31 : vector<1x128x128xbf16> to vector<128x128xbf16>
    %cst_31 = arith.constant dense<0.000000e+00> : vector<78x128xf32>
    %33 = tpu.matmul %30, %32, %cst_31 {dimension_numbers = #tpu.dot_dimension_numbers<[1], [0], [0], [1], [0, 0, 1, 1], [], []>} : vector<78x128xbf16>, vector<128x128xbf16>, vector<78x128xf32> -> vector<78x128xf32>
    %34 = arith.addf %28, %33 : vector<78x128xf32>
    %c0_32 = arith.constant 0 : index
    %c20 = arith.constant 20 : index
    %c0_33 = arith.constant 0 : index
    %35 = vector.load %arg2[%c0_32, %c20, %c0_33] : memref<1x100x128xbf16, #tpu.memory_space<vmem>>, vector<1x78x128xbf16>
    %36 = vector.shape_cast %35 : vector<1x78x128xbf16> to vector<78x128xbf16>
    %c6 = arith.constant 6 : index
    %c0_34 = arith.constant 0 : index
    %c0_35 = arith.constant 0 : index
    %37 = vector.load %arg3[%c6, %c0_34, %c0_35] : memref<9x128x128xbf16, #tpu.memory_space<vmem>>, vector<1x128x128xbf16>
    %38 = vector.shape_cast %37 : vector<1x128x128xbf16> to vector<128x128xbf16>
    %cst_36 = arith.constant dense<0.000000e+00> : vector<78x128xf32>
    %39 = tpu.matmul %36, %38, %cst_36 {dimension_numbers = #tpu.dot_dimension_numbers<[1], [0], [0], [1], [0, 0, 1, 1], [], []>} : vector<78x128xbf16>, vector<128x128xbf16>, vector<78x128xf32> -> vector<78x128xf32>
    %40 = arith.addf %34, %39 : vector<78x128xf32>
    %c0_37 = arith.constant 0 : index
    %c21 = arith.constant 21 : index
    %c0_38 = arith.constant 0 : index
    %41 = vector.load %arg2[%c0_37, %c21, %c0_38] : memref<1x100x128xbf16, #tpu.memory_space<vmem>>, vector<1x78x128xbf16>
    %42 = vector.shape_cast %41 : vector<1x78x128xbf16> to vector<78x128xbf16>
    %c7 = arith.constant 7 : index
    %c0_39 = arith.constant 0 : index
    %c0_40 = arith.constant 0 : index
    %43 = vector.load %arg3[%c7, %c0_39, %c0_40] : memref<9x128x128xbf16, #tpu.memory_space<vmem>>, vector<1x128x128xbf16>
    %44 = vector.shape_cast %43 : vector<1x128x128xbf16> to vector<128x128xbf16>
    %cst_41 = arith.constant dense<0.000000e+00> : vector<78x128xf32>
    %45 = tpu.matmul %42, %44, %cst_41 {dimension_numbers = #tpu.dot_dimension_numbers<[1], [0], [0], [1], [0, 0, 1, 1], [], []>} : vector<78x128xbf16>, vector<128x128xbf16>, vector<78x128xf32> -> vector<78x128xf32>
    %46 = arith.addf %40, %45 : vector<78x128xf32>
    %c0_42 = arith.constant 0 : index
    %c22 = arith.constant 22 : index
    %c0_43 = arith.constant 0 : index
    %47 = vector.load %arg2[%c0_42, %c22, %c0_43] : memref<1x100x128xbf16, #tpu.memory_space<vmem>>, vector<1x78x128xbf16>
    %48 = vector.shape_cast %47 : vector<1x78x128xbf16> to vector<78x128xbf16>
    %c8 = arith.constant 8 : index
    %c0_44 = arith.constant 0 : index
    %c0_45 = arith.constant 0 : index
    %49 = vector.load %arg3[%c8, %c0_44, %c0_45] : memref<9x128x128xbf16, #tpu.memory_space<vmem>>, vector<1x128x128xbf16>
    %50 = vector.shape_cast %49 : vector<1x128x128xbf16> to vector<128x128xbf16>
    %cst_46 = arith.constant dense<0.000000e+00> : vector<78x128xf32>
    %51 = tpu.matmul %48, %50, %cst_46 {dimension_numbers = #tpu.dot_dimension_numbers<[1], [0], [0], [1], [0, 0, 1, 1], [], []>} : vector<78x128xbf16>, vector<128x128xbf16>, vector<78x128xf32> -> vector<78x128xf32>
    %52 = arith.addf %46, %51 : vector<78x128xf32>
    %c0_47 = arith.constant 0 : index
    %c0_48 = arith.constant 0 : index
    %53 = vector.load %arg4[%c0_47, %c0_48] : memref<1x128xf32, #tpu.memory_space<vmem>>, vector<1x128xf32>
    %54 = vector.shape_cast %53 : vector<1x128xf32> to vector<128xf32>
    %55 = vector.shape_cast %54 : vector<128xf32> to vector<1x128xf32>
    %56 = vector.broadcast %55 : vector<1x128xf32> to vector<78x128xf32>
    %57 = arith.mulf %52, %56 : vector<78x128xf32>
    %c0_49 = arith.constant 0 : index
    %c0_50 = arith.constant 0 : index
    %58 = vector.load %arg5[%c0_49, %c0_50] : memref<1x128xf32, #tpu.memory_space<vmem>>, vector<1x128xf32>
    %59 = vector.shape_cast %58 : vector<1x128xf32> to vector<128xf32>
    %60 = vector.shape_cast %59 : vector<128xf32> to vector<1x128xf32>
    %61 = vector.broadcast %60 : vector<1x128xf32> to vector<78x128xf32>
    %62 = arith.addf %57, %61 : vector<78x128xf32>
    %cst_51 = arith.constant 0.000000e+00 : f32
    %63 = vector.broadcast %cst_51 : f32 to vector<78x128xf32>
    %64 = arith.maximumf %62, %63 : vector<78x128xf32>
    %65 = arith.truncf %64 : vector<78x128xf32> to vector<78x128xbf16>
    %c0_52 = arith.constant 0 : index
    %c0_53 = arith.constant 0 : index
    %c0_54 = arith.constant 0 : index
    %66 = vector.load %arg6[%c0_52, %c0_53, %c0_54] : memref<1x80x128xbf16, #tpu.memory_space<vmem>>, vector<1x78x128xbf16>
    %67 = vector.shape_cast %66 : vector<1x78x128xbf16> to vector<78x128xbf16>
    %68 = vector.shape_cast %65 : vector<78x128xbf16> to vector<1x78x128xbf16>
    tpu.vector_store %arg6[%c0_52, %c0_53, %c0_54], %68 {strides = array<i32>} : memref<1x80x128xbf16, #tpu.memory_space<vmem>>, vector<1x78x128xbf16>,
    return
  }
  func.func @transform_0(%arg0: i32, %arg1: i32) -> (i32, i32, i32) {
    %c0_i32 = arith.constant 0 : i32
    %c0_i32_0 = arith.constant 0 : i32
    return %arg0, %c0_i32, %arg1 : i32, i32, i32
  }
  func.func @transform_1(%arg0: i32, %arg1: i32) -> (i32, i32, i32) {
    %c0_i32 = arith.constant 0 : i32
    %c0_i32_0 = arith.constant 0 : i32
    %c0_i32_1 = arith.constant 0 : i32
    return %c0_i32, %c0_i32_0, %arg1 : i32, i32, i32
  }
  func.func @transform_2(%arg0: i32, %arg1: i32) -> (i32, i32) {
    %c0_i32 = arith.constant 0 : i32
    %c0_i32_0 = arith.constant 0 : i32
    return %c0_i32, %arg1 : i32, i32
  }
  func.func @transform_3(%arg0: i32, %arg1: i32) -> (i32, i32) {
    %c0_i32 = arith.constant 0 : i32
    %c0_i32_0 = arith.constant 0 : i32
    return %c0_i32, %arg1 : i32, i32
  }
  func.func @transform_4(%arg0: i32, %arg1: i32) -> (i32, i32, i32) {
    %c0_i32 = arith.constant 0 : i32
    %c0_i32_0 = arith.constant 0 : i32
    return %arg0, %c0_i32, %arg1 : i32, i32, i32
  }
}

</mosaic_0001>

<llo_original>
// kernel: grouped_conv3x3_s1.1
$region0: #{grouped_conv3x3_s1.1}
  #allocation0 [shape = 'u32[]', space=smem, size = 0x4, offset = 0x4, fixed_abs, tag = 'smem constant byte address 0x4 - core index']
  #allocation1 [shape = 'u32[144,128]{1,0:T(1,128)}', space=vmem, size = 0x12000, scoped, tag = 'internal scratch']
  %s0 = inlined_call_operand.vmem [shape: bf16[2,100,256], index: 0, kind: input, shape index: {}]
  %s1 = inlined_call_operand.hbm [shape: bf16[9,128,256], index: 1, kind: input, shape index: {}]
  %s2 = inlined_call_operand.vmem [shape: f32[1,256], index: 2, kind: input, shape index: {}]
  %s3 = inlined_call_operand.vmem [shape: f32[1,256], index: 3, kind: input, shape index: {}]
  %s4 = inlined_call_operand.vmem [shape: bf16[2,80,256], index: 4, kind: output, shape index: {}]
  %s5 = sld [smem:[#allocation0]]
  $region131: #{grouped_conv3x3_s1.1} parent=0
    _
  %s7 = ssub.s32 1, %s5
  %s8 = scalar_select 0, %s7, %s5
  $region1: #{grouped_conv3x3_s1.1} parent=0
    #allocation2 [shape = 'u8[53248]{0}', space=vmem, size = 0xd000, scoped, tag = 'input window, operand 0']
    #allocation3 [shape = 'u8[589824]{0}', space=vmem, size = 0x90000, scoped, tag = 'input window, operand 1']
    #allocation4 [shape = 's32[2]{0}', space=sflag, size = 0x8, scoped, tag = 'scoped memory for grouped_conv3x3_s1.1']
    #allocation5 [shape = 'u8[40960]{0}', space=vmem, size = 0xa000, scoped, tag = 'output window, operand 0']
    %9 = vsyncpa [#allocation4], 0
    %s10 = scalar_lea.sflag [#allocation4], 1
    %11 = vsyncpa %s10, 0
    loop: start=0, step=1, limit=6
    $region2: #{grouped_conv3x3_s1.1} parent=1 // loop_pre_header
      _
    $region3: #{grouped_conv3x3_s1.1} parent=1 // loop_header
      %s13 = sphi 0, %s17
      %p14 = scmp.ge.s32.totalorder %s13, 6
      %s20 = sphi 0, %s32
      %s21 = sphi 0, %s28
      %s22 = sphi 0, %s20
      %s23 = sphi 0, %s21
      %s24 = sphi 0, %s22
      %s25 = sphi 0, %s23
      %s37 = sphi 0, %s39
      %s40 = sphi 0, %s37
      %s41 = sphi 0, %s40
      %s57 = sphi 0, %s41
      %s63 = sphi 0, %s65
      %s66 = sphi 0, %s63
      %s67 = sphi 0, %s66
      %s83 = sphi 0, %s67
      %s89 = sphi 0, %s91
      %s92 = sphi 0, %s89
      %s93 = sphi 0, %s92
      %s109 = sphi 0, %s93
      %s115 = sphi 0, %s117
      %s118 = sphi 0, %s115
      %s119 = sphi 0, %s118
      %s135 = sphi 0, %s119
      %s143 = sphi 0, %s145
      %s146 = sphi 0, %s143
      %s147 = sphi 0, %s146
      %s163 = sphi 0, %s147
    $region4: #{grouped_conv3x3_s1.1} parent=1 // loop_header_branch
      %16 = sbr.rel (%p14) target = $region8
    $region5: #{grouped_conv3x3_s1.1} parent=1 // loop_body
      %s18 = ssub.s32 %s13, 1
      %s19 = ssub.s32 %s13, 2
      %s26 = sadd.s32 1, %s21
      %p27 = scmp.ge.s32.totalorder %s26, 2
      %s28 = scalar_select %p27, 0, %s26
      %s29 = sadd.s32 1, %s20
      %s30 = scalar_select %p27, %s29, %s20
      %p31 = scmp.ge.s32.totalorder %s30, 2
      %s32 = scalar_select %p31, 0, %s30
      %s33 = ssub.s32 %s20, %s32
      %s34 = ssub.s32 %s21, %s28
      %s35 = sor.u32 %s33, %s34
      %p36 = scmp.eq.s32.totalorder %s35, 0
      %s38 = sadd.s32 %s37, 1
      %s39 = scalar_select %p36, %s37, %s38
      %p42 = pneg %p36
      %p43 = scmp.eq.s32.totalorder %s13, 3
      %p44 = por %p42, %p43
      %p45 = scmp.ne.s32.totalorder %s37, %s40
      %p46 = scmp.eq.s32.totalorder %s13, 0
      %p47 = por %p45, %p46
      %p48 = scmp.ne.s32.totalorder %s37, %s40
      %p49 = scmp.eq.s32.totalorder %s18, 3
      %p50 = por %p48, %p49
      %p51 = scmp.ne.s32.totalorder %s40, %s41
      %p52 = scmp.eq.s32.totalorder %s18, 0
      %p53 = por %p51, %p52
      %p54 = scmp.ne.s32.totalorder %s40, %s41
      %p55 = scmp.eq.s32.totalorder %s19, 3
      %p56 = por %p54, %p55
      %p58 = scmp.ne.s32.totalorder %s41, %s57
      %p59 = scmp.eq.s32.totalorder %s19, 0
      %p60 = por %p58, %p59
      %s61 = ssub.s32 %s21, %s28
      %p62 = scmp.eq.s32.totalorder %s61, 0
      %s64 = sadd.s32 %s63, 1
      %s65 = scalar_select %p62, %s63, %s64
      %p68 = pneg %p62
      %p69 = scmp.eq.s32.totalorder %s13, 3
      %p70 = por %p68, %p69
      %p71 = scmp.ne.s32.totalorder %s63, %s66
      %p72 = scmp.eq.s32.totalorder %s13, 0
      %p73 = por %p71, %p72
      %p74 = scmp.ne.s32.totalorder %s63, %s66
      %p75 = scmp.eq.s32.totalorder %s18, 3
      %p76 = por %p74, %p75
      %p77 = scmp.ne.s32.totalorder %s66, %s67
      %p78 = scmp.eq.s32.totalorder %s18, 0
      %p79 = por %p77, %p78
      %p80 = scmp.ne.s32.totalorder %s66, %s67
      %p81 = scmp.eq.s32.totalorder %s19, 3
      %p82 = por %p80, %p81
      %p84 = scmp.ne.s32.totalorder %s67, %s83
      %p85 = scmp.eq.s32.totalorder %s19, 0
      %p86 = por %p84, %p85
      %s87 = ssub.s32 %s21, %s28
      %p88 = scmp.eq.s32.totalorder %s87, 0
      %s90 = sadd.s32 %s89, 1
      %s91 = scalar_select %p88, %s89, %s90
      %p94 = pneg %p88
      %p95 = scmp.eq.s32.totalorder %s13, 3
      %p96 = por %p94, %p95
      %p97 = scmp.ne.s32.totalorder %s89, %s92
      %p98 = scmp.eq.s32.totalorder %s13, 0
      %p99 = por %p97, %p98
      %p100 = scmp.ne.s32.totalorder %s89, %s92
      %p101 = scmp.eq.s32.totalorder %s18, 3
      %p102 = por %p100, %p101
      %p103 = scmp.ne.s32.totalorder %s92, %s93
      %p104 = scmp.eq.s32.totalorder %s18, 0
      %p105 = por %p103, %p104
      %p106 = scmp.ne.s32.totalorder %s92, %s93
      %p107 = scmp.eq.s32.totalorder %s19, 3
      %p108 = por %p106, %p107
      %p110 = scmp.ne.s32.totalorder %s93, %s109
      %p111 = scmp.eq.s32.totalorder %s19, 0
      %p112 = por %p110, %p111
      %s113 = ssub.s32 %s21, %s28
      %p114 = scmp.eq.s32.totalorder %s113, 0
      %s116 = sadd.s32 %s115, 1
      %s117 = scalar_select %p114, %s115, %s116
      %p120 = pneg %p114
      %p121 = scmp.eq.s32.totalorder %s13, 3
      %p122 = por %p120, %p121
      %p123 = scmp.ne.s32.totalorder %s115, %s118
      %p124 = scmp.eq.s32.totalorder %s13, 0
      %p125 = por %p123, %p124
      %p126 = scmp.ne.s32.totalorder %s115, %s118
      %p127 = scmp.eq.s32.totalorder %s18, 3
      %p128 = por %p126, %p127
      %p129 = scmp.ne.s32.totalorder %s118, %s119
      %p130 = scmp.eq.s32.totalorder %s18, 0
      %p131 = por %p129, %p130
      %p132 = scmp.ne.s32.totalorder %s118, %s119
      %p133 = scmp.eq.s32.totalorder %s19, 3
      %p134 = por %p132, %p133
      %p136 = scmp.ne.s32.totalorder %s119, %s135
      %p137 = scmp.eq.s32.totalorder %s19, 0
      %p138 = por %p136, %p137
      %s139 = ssub.s32 %s20, %s32
      %s140 = ssub.s32 %s21, %s28
      %s141 = sor.u32 %s139, %s140
      %p142 = scmp.eq.s32.totalorder %s141, 0
      %s144 = sadd.s32 %s143, 1
      %s145 = scalar_select %p142, %s143, %s144
      %p148 = pneg %p142
      %p149 = scmp.eq.s32.totalorder %s13, 3
      %p150 = por %p148, %p149
      %p151 = scmp.ne.s32.totalorder %s143, %s146
      %p152 = scmp.eq.s32.totalorder %s13, 0
      %p153 = por %p151, %p152
      %p154 = scmp.ne.s32.totalorder %s143, %s146
      %p155 = scmp.eq.s32.totalorder %s18, 3
      %p156 = por %p154, %p155
      %p157 = scmp.ne.s32.totalorder %s146, %s147
      %p158 = scmp.eq.s32.totalorder %s18, 0
      %p159 = por %p157, %p158
      %p160 = scmp.ne.s32.totalorder %s146, %s147
      %p161 = scmp.eq.s32.totalorder %s19, 3
      %p162 = por %p160, %p161
      %p164 = scmp.ne.s32.totalorder %s147, %s163
      %p165 = scmp.eq.s32.totalorder %s19, 0
      %p166 = por %p164, %p165
      %p167 = scmp.le.s32.totalorder 1, %s13
      %p168 = scmp.lt.s32.totalorder %s13, 5
      %p169 = pnand %p167, %p168
      %p170 = pneg %p169
      // Predicated region
      $region9: #{grouped_conv3x3_s1.1} parent=5 // pred_check
        _
      $region10: #{grouped_conv3x3_s1.1} parent=5 // pred_check_branch
        %172 = sbr.rel (%p169) target = $region12
      $region11: #{grouped_conv3x3_s1.1} parent=5 // pred_region
        %s173 = ssub.s32 %s13, 1
      $region12: #{grouped_conv3x3_s1.1} parent=5 // pred_fallthru
        _
      %p174 = scmp.lt.s32.totalorder %s13, 4
      // Predicated region
      $region13: #{grouped_conv3x3_s1.1} parent=5 // pred_check
        %p175 = pneg %p174
      $region14: #{grouped_conv3x3_s1.1} parent=5 // pred_check_branch
        %177 = sbr.rel (%p175) target = $region16
      $region15: #{grouped_conv3x3_s1.1} parent=5 // pred_region
        // Predicated region
        $region17: #{grouped_conv3x3_s1.1} parent=15 // pred_check
          %p178 = pneg %p47
        $region18: #{grouped_conv3x3_s1.1} parent=15 // pred_check_branch
          %180 = sbr.rel (%p178) target = $region20
        $region19: #{grouped_conv3x3_s1.1} parent=15 // pred_region
          %s181 = sand.u32 %s37, 1
          %s182 = sand.u32 %s37, 1
          %s183 = smul.addr %s182, 52
          %s184 = scalar_lea.vmem [#allocation2], %s183
          %s185 = smul.addr %s20, 26
          %s186 = sadd.s32 %s21, %s185
          %s187 = smul.addr %s186, 4
          %s188 = scalar_lea.vmem %s0, %s187
          // Predicated region
          $region21: #{grouped_conv3x3_s1.1} parent=19 // pred_check
            _
          $region22: #{grouped_conv3x3_s1.1} parent=19 // pred_check_branch
            %190 = sbr.rel (0) target = $region24
          $region23: #{grouped_conv3x3_s1.1} parent=19 // pred_region
            // Predicated region
            $region25: #{grouped_conv3x3_s1.1} parent=23 // pred_check
              _
            $region26: #{grouped_conv3x3_s1.1} parent=23 // pred_check_branch
              %192 = sbr.rel target = $region28
            $region27: #{grouped_conv3x3_s1.1} parent=23 // pred_region
              // Predicated region
              $region40: #{grouped_conv3x3_s1.1} parent=27 // pred_check
                _
              $region41: #{grouped_conv3x3_s1.1} parent=27 // pred_check_branch
                %231 = sbr.rel (0) target = $region43
              $region42: #{grouped_conv3x3_s1.1} parent=27 // pred_region
                loop: start=0, step=1, limit=1
                $region44: #{grouped_conv3x3_s1.1} parent=42 // loop_pre_header
                  _
                $region45: #{grouped_conv3x3_s1.1} parent=42 // loop_header
                  %s233 = sphi 0, %s237
                  %p234 = scmp.ge.s32.totalorder %s233, 1
                  %s238 = sphi %s188, %s188
                  %s239 = sphi %s184, %s184
                $region46: #{grouped_conv3x3_s1.1} parent=42 // loop_header_branch
                  %236 = sbr.rel (%p234) target = $region50
                $region47: #{grouped_conv3x3_s1.1} parent=42 // loop_body
                  _
                $region48: #{grouped_conv3x3_s1.1} parent=42 // loop_footer
                  %s237 = sadd.s32 1, %s233
                $region49: #{grouped_conv3x3_s1.1} parent=42 // loop_footer_branch
                  %232 = sbr.rel target = $region45
                $region50: #{grouped_conv3x3_s1.1} parent=42 // loop_exit
                  _
                loop: start=0, step=1, limit=1
                $region51: #{grouped_conv3x3_s1.1} parent=42 // loop_pre_header
                  _
                $region52: #{grouped_conv3x3_s1.1} parent=42 // loop_header
                  %s242 = sphi 0, %s246
                  %p243 = scmp.ge.s32.totalorder %s242, 1
                  %s247 = sphi %s188, %s188
                  %s248 = sphi %s184, %s184
                $region53: #{grouped_conv3x3_s1.1} parent=42 // loop_header_branch
                  %245 = sbr.rel (%p243) target = $region57
                $region54: #{grouped_conv3x3_s1.1} parent=42 // loop_body
                  %v249 = vld [vmem:[%s247] sm:$0xf]
                  %250 = vst [vmem:[%s248] sm:$0xf] %v249
                  %v251 = vld [vmem:[%s247 + $0x8] sm:$0xf]
                  %252 = vst [vmem:[%s248 + $0x4] sm:$0xf] %v251
                  %v253 = vld [vmem:[%s247 + $0x10] sm:$0xf]
                  %254 = vst [vmem:[%s248 + $0x8] sm:$0xf] %v253
                  %v255 = vld [vmem:[%s247 + $0x18] sm:$0xf]
                  %256 = vst [vmem:[%s248 + $0xc] sm:$0xf] %v255
                  %v257 = vld [vmem:[%s247 + $0x20] sm:$0xf]
                  %258 = vst [vmem:[%s248 + $0x10] sm:$0xf] %v257
                  %v259 = vld [vmem:[%s247 + $0x28] sm:$0xf]
                  %260 = vst [vmem:[%s248 + $0x14] sm:$0xf] %v259
                  %v261 = vld [vmem:[%s247 + $0x30] sm:$0xf]
                  %262 = vst [vmem:[%s248 + $0x18] sm:$0xf] %v261
                  %v263 = vld [vmem:[%s247 + $0x38] sm:$0xf]
                  %264 = vst [vmem:[%s248 + $0x1c] sm:$0xf] %v263
                  %v265 = vld [vmem:[%s247 + $0x40] sm:$0xf]
                  %266 = vst [vmem:[%s248 + $0x20] sm:$0xf] %v265
                  %v267 = vld [vmem:[%s247 + $0x48] sm:$0xf]
                  %268 = vst [vmem:[%s248 + $0x24] sm:$0xf] %v267
                  %v269 = vld [vmem:[%s247 + $0x50] sm:$0xf]
                  %270 = vst [vmem:[%s248 + $0x28] sm:$0xf] %v269
                  %v271 = vld [vmem:[%s247 + $0x58] sm:$0xf]
                  %272 = vst [vmem:[%s248 + $0x2c] sm:$0xf] %v271
                  %v273 = vld [vmem:[%s247 + $0x60] sm:$0xf]
                  %274 = vst [vmem:[%s248 + $0x30] sm:$0xf] %v273
                $region55: #{grouped_conv3x3_s1.1} parent=42 // loop_footer
                  %s246 = sadd.s32 1, %s242
                $region56: #{grouped_conv3x3_s1.1} parent=42 // loop_footer_branch
                  %241 = sbr.rel target = $region52
                $region57: #{grouped_conv3x3_s1.1} parent=42 // loop_exit
                  _
              $region43: #{grouped_conv3x3_s1.1} parent=27 // pred_fallthru
                _
            $region28: #{grouped_conv3x3_s1.1} parent=23 // pred_fallthru
              _
            // Predicated region
            $region29: #{grouped_conv3x3_s1.1} parent=23 // pred_check
              _
            $region30: #{grouped_conv3x3_s1.1} parent=23 // pred_check_branch
              %194 = sbr.rel (0) target = $region32
            $region31: #{grouped_conv3x3_s1.1} parent=23 // pred_region
              loop: start=0, step=1, limit=1
              $region33: #{grouped_conv3x3_s1.1} parent=31 // loop_pre_header
                _
              $region34: #{grouped_conv3x3_s1.1} parent=31 // loop_header
                %s197 = sphi 0, %s201
                %p198 = scmp.ge.s32.totalorder %s197, 1
                %s202 = sphi %s188, %s188
                %s203 = sphi %s184, %s184
              $region35: #{grouped_conv3x3_s1.1} parent=31 // loop_header_branch
                %200 = sbr.rel (%p198) target = $region39
              $region36: #{grouped_conv3x3_s1.1} parent=31 // loop_body
                %v204 = vld [vmem:[%s202] sm:$0xf]
                %205 = vst [vmem:[%s203] sm:$0xf] %v204
                %v206 = vld [vmem:[%s202 + $0x8] sm:$0xf]
                %207 = vst [vmem:[%s203 + $0x4] sm:$0xf] %v206
                %v208 = vld [vmem:[%s202 + $0x10] sm:$0xf]
                %209 = vst [vmem:[%s203 + $0x8] sm:$0xf] %v208
                %v210 = vld [vmem:[%s202 + $0x18] sm:$0xf]
                %211 = vst [vmem:[%s203 + $0xc] sm:$0xf] %v210
                %v212 = vld [vmem:[%s202 + $0x20] sm:$0xf]
                %213 = vst [vmem:[%s203 + $0x10] sm:$0xf] %v212
                %v214 = vld [vmem:[%s202 + $0x28] sm:$0xf]
                %215 = vst [vmem:[%s203 + $0x14] sm:$0xf] %v214
                %v216 = vld [vmem:[%s202 + $0x30] sm:$0xf]
                %217 = vst [vmem:[%s203 + $0x18] sm:$0xf] %v216
                %v218 = vld [vmem:[%s202 + $0x38] sm:$0xf]
                %219 = vst [vmem:[%s203 + $0x1c] sm:$0xf] %v218
                %v220 = vld [vmem:[%s202 + $0x40] sm:$0xf]
                %221 = vst [vmem:[%s203 + $0x20] sm:$0xf] %v220
                %v222 = vld [vmem:[%s202 + $0x48] sm:$0xf]
                %223 = vst [vmem:[%s203 + $0x24] sm:$0xf] %v222
                %v224 = vld [vmem:[%s202 + $0x50] sm:$0xf]
                %225 = vst [vmem:[%s203 + $0x28] sm:$0xf] %v224
                %v226 = vld [vmem:[%s202 + $0x58] sm:$0xf]
                %227 = vst [vmem:[%s203 + $0x2c] sm:$0xf] %v226
                %v228 = vld [vmem:[%s202 + $0x60] sm:$0xf]
                %229 = vst [vmem:[%s203 + $0x30] sm:$0xf] %v228
              $region37: #{grouped_conv3x3_s1.1} parent=31 // loop_footer
                %s201 = sadd.s32 1, %s197
              $region38: #{grouped_conv3x3_s1.1} parent=31 // loop_footer_branch
                %196 = sbr.rel target = $region34
              $region39: #{grouped_conv3x3_s1.1} parent=31 // loop_exit
                _
            $region32: #{grouped_conv3x3_s1.1} parent=23 // pred_fallthru
              _
          $region24: #{grouped_conv3x3_s1.1} parent=19 // pred_fallthru
            _
          %275 = vnop
        $region20: #{grouped_conv3x3_s1.1} parent=15 // pred_fallthru
          _
        // Predicated region
        $region58: #{grouped_conv3x3_s1.1} parent=15 // pred_check
          %p276 = pneg %p73
        $region59: #{grouped_conv3x3_s1.1} parent=15 // pred_check_branch
          %278 = sbr.rel (%p276) target = $region61
        $region60: #{grouped_conv3x3_s1.1} parent=15 // pred_region
          %s279 = sand.u32 %s63, 1
          %s280 = scalar_lea.sflag [#allocation4], %s279
          %s281 = sand.u32 %s63, 1
          %s282 = smul.addr %s281, 576
          %s283 = scalar_lea.vmem [#allocation3], %s282
          %s285 = ssub.s32 9216, 9216
          %286 = vsyncadd %s280, %s285
          %s287 = smul.addr %s21, 64
          %s288 = scalar_lea.hbm %s1, %s287
          %s289 = sshll.u32 %s283, 4
          %s290 = int_to_ptr.vmem [resolvable:$true] %s289
          %295 = dma.hbm_to_vmem [thread:$0]  %s288, 9216, %s290, %s280, 128, 64, 4
        $region61: #{grouped_conv3x3_s1.1} parent=15 // pred_fallthru
          _
        // Predicated region
        $region62: #{grouped_conv3x3_s1.1} parent=15 // pred_check
          %p296 = pneg %p99
        $region63: #{grouped_conv3x3_s1.1} parent=15 // pred_check_branch
          %298 = sbr.rel (%p296) target = $region65
        $region64: #{grouped_conv3x3_s1.1} parent=15 // pred_region
          %p299 = scmp.lt.s32.totalorder %s21, 1
          %s300 = scalar_select %p299, %s21, 1
          %s301 = scalar_lea.vmem %s2, %s300
        $region65: #{grouped_conv3x3_s1.1} parent=15 // pred_fallthru
          _
        // Predicated region
        $region66: #{grouped_conv3x3_s1.1} parent=15 // pred_check
          %p302 = pneg %p125
        $region67: #{grouped_conv3x3_s1.1} parent=15 // pred_check_branch
          %304 = sbr.rel (%p302) target = $region69
        $region68: #{grouped_conv3x3_s1.1} parent=15 // pred_region
          %p305 = scmp.lt.s32.totalorder %s21, 1
          %s306 = scalar_select %p305, %s21, 1
          %s307 = scalar_lea.vmem %s3, %s306
        $region69: #{grouped_conv3x3_s1.1} parent=15 // pred_fallthru
          _
      $region16: #{grouped_conv3x3_s1.1} parent=5 // pred_fallthru
        _
      %p308 = scmp.le.s32.totalorder 1, %s13
      %p309 = scmp.lt.s32.totalorder %s13, 5
      %p310 = pnand %p308, %p309
      %p311 = pneg %p310
      // Predicated region
      $region70: #{grouped_conv3x3_s1.1} parent=5 // pred_check
        _
      $region71: #{grouped_conv3x3_s1.1} parent=5 // pred_check_branch
        %313 = sbr.rel (%p310) target = $region73
      $region72: #{grouped_conv3x3_s1.1} parent=5 // pred_region
        %s314 = ssub.s32 %s13, 1
        %s315 = sand.u32 %s40, 1
        %s316 = sand.u32 %s40, 1
        %s317 = smul.addr %s316, 52
        %s318 = scalar_lea.vmem [#allocation2], %s317
        // Predicated region
        $region74: #{grouped_conv3x3_s1.1} parent=72 // pred_check
          %p319 = pneg %p53
        $region75: #{grouped_conv3x3_s1.1} parent=72 // pred_check_branch
          %321 = sbr.rel (%p319) target = $region77
        $region76: #{grouped_conv3x3_s1.1} parent=72 // pred_region
          _
        $region77: #{grouped_conv3x3_s1.1} parent=72 // pred_fallthru
          _
        %s322 = sand.u32 %s66, 1
        %s323 = scalar_lea.sflag [#allocation4], %s322
        %s324 = sand.u32 %s66, 1
        %s325 = smul.addr %s324, 576
        %s326 = scalar_lea.vmem [#allocation3], %s325
        // Predicated region
        $region78: #{grouped_conv3x3_s1.1} parent=72 // pred_check
          %p327 = pneg %p79
        $region79: #{grouped_conv3x3_s1.1} parent=72 // pred_check_branch
          %329 = sbr.rel (%p327) target = $region81
        $region80: #{grouped_conv3x3_s1.1} parent=72 // pred_region
          %330 = dma.done %s323, 9216
        $region81: #{grouped_conv3x3_s1.1} parent=72 // pred_fallthru
          _
        %s331 = sand.u32 %s40, 1
        %s332 = sand.u32 %s40, 1
        %s333 = smul.addr %s332, 52
        %s334 = scalar_lea.vmem [#allocation2], %s333
        %p335 = pneg %p53
        %p336 = pneg %p50
        %s337 = sand.u32 %s66, 1
        %s338 = scalar_lea.sflag [#allocation4], %s337
        %s339 = sand.u32 %s66, 1
        %s340 = smul.addr %s339, 576
        %s341 = scalar_lea.vmem [#allocation3], %s340
        %p342 = pneg %p79
        %p343 = pneg %p76
        %p344 = scmp.lt.s32.totalorder %s23, 1
        %s345 = scalar_select %p344, %s23, 1
        %s346 = scalar_lea.vmem %s2, %s345
        %p347 = pneg %p105
        %p348 = pneg %p102
        %p349 = scmp.lt.s32.totalorder %s23, 1
        %s350 = scalar_select %p349, %s23, 1
        %s351 = scalar_lea.vmem %s3, %s350
        %p352 = pneg %p131
        %p353 = pneg %p128
        %p354 = pneg %p159
        %p355 = pneg %p156
        %s356 = sand.u32 %s146, 1
        %s357 = sand.u32 %s146, 1
        %s358 = smul.addr %s357, 40
        %s359 = scalar_lea.vmem [#allocation5], %s358
        %p360 = scmp.lt.s32.totalorder %s23, 1
        %s361 = scalar_select %p360, %s23, 1
        %s362 = scalar_lea.vmem %s2, %s361
        %p363 = scmp.lt.s32.totalorder %s23, 1
        %s364 = scalar_select %p363, %s23, 1
        %s365 = scalar_lea.vmem %s3, %s364
        %v367 = vld [vmem:[%s318] sm:$0xf]
        %v368 = vld [vmem:[%s318 + $0x4] sm:$0xf]
        %v369 = vld [vmem:[%s318 + $0x8] sm:$0xf]
        %v370 = vld [vmem:[%s318 + $0xc] sm:$0xf]
        %v371 = vld [vmem:[%s318 + $0x10] sm:$0xf]
        %v372 = vld [vmem:[%s318 + $0x14] sm:$0xf]
        %v373 = vld [vmem:[%s318 + $0x18] sm:$0xf]
        %v374 = vld [vmem:[%s318 + $0x1c] sm:$0xf]
        %v375 = vld [vmem:[%s318 + $0x20] sm:$0xf]
        %v376 = vld [vmem:[%s318 + $0x24] sm:$0x7]
        %v377 = vld [vmem:[%s326] sm:$0xf]
        %v378 = vld [vmem:[%s326 + $0x4] sm:$0xf]
        %v379 = vld [vmem:[%s326 + $0x8] sm:$0xf]
        %v380 = vld [vmem:[%s326 + $0xc] sm:$0xf]
        %v381 = vld [vmem:[%s326 + $0x10] sm:$0xf]
        %v382 = vld [vmem:[%s326 + $0x14] sm:$0xf]
        %v383 = vld [vmem:[%s326 + $0x18] sm:$0xf]
        %v384 = vld [vmem:[%s326 + $0x1c] sm:$0xf]
        %v385 = vld [vmem:[%s326 + $0x20] sm:$0xf]
        %v386 = vld [vmem:[%s326 + $0x24] sm:$0xf]
        %v387 = vld [vmem:[%s326 + $0x28] sm:$0xf]
        %v388 = vld [vmem:[%s326 + $0x2c] sm:$0xf]
        %v389 = vld [vmem:[%s326 + $0x30] sm:$0xf]
        %v390 = vld [vmem:[%s326 + $0x34] sm:$0xf]
        %v391 = vld [vmem:[%s326 + $0x38] sm:$0xf]
        %v392 = vld [vmem:[%s326 + $0x3c] sm:$0xf]
        %v393 = vld [vmem:[%s318 + $0x24] sm:$0xf]
        %s394 = scalar_lea.vmem %s326, 64 [#allocation3]
        %v395 = vld [vmem:[%s394] sm:$0xf]
        %v396 = vld [vmem:[%s394 + $0x4] sm:$0xf]
        %v397 = vld [vmem:[%s394 + $0x8] sm:$0xf]
        %v398 = vld [vmem:[%s394 + $0xc] sm:$0xf]
        %v399 = vld [vmem:[%s394 + $0x10] sm:$0xf]
        %v400 = vld [vmem:[%s394 + $0x14] sm:$0xf]
        %v401 = vld [vmem:[%s394 + $0x18] sm:$0xf]
        %v402 = vld [vmem:[%s394 + $0x1c] sm:$0xf]
        %v403 = vld [vmem:[%s394 + $0x20] sm:$0xf]
        %v404 = vld [vmem:[%s394 + $0x24] sm:$0xf]
        %v405 = vld [vmem:[%s394 + $0x28] sm:$0xf]
        %v406 = vld [vmem:[%s394 + $0x2c] sm:$0xf]
        %v407 = vld [vmem:[%s394 + $0x30] sm:$0xf]
        %v408 = vld [vmem:[%s394 + $0x34] sm:$0xf]
        %v409 = vld [vmem:[%s394 + $0x38] sm:$0xf]
        %v410 = vld [vmem:[%s394 + $0x3c] sm:$0xf]
        %v421 = vunpack.c.l.b16 %v367
        %v422 = vunpack.c.l.b16 %v368
        %v423 = vunpack.c.l.b16 %v369
        %v424 = vunpack.c.l.b16 %v370
        %v425 = vunpack.c.l.b16 %v371
        %v426 = vunpack.c.l.b16 %v372
        %v427 = vunpack.c.l.b16 %v373
        %v428 = vunpack.c.l.b16 %v374
        %v429 = vunpack.c.l.b16 %v375
        %v430 = vunpack.c.l.b16 %v393
        %v431 = vpack.c.b16 %v422, %v421
        %v432 = vpack.c.b16 %v424, %v423
        %v433 = vpack.c.b16 %v426, %v425
        %v434 = vpack.c.b16 %v428, %v427
        %v435 = vpack.c.b16 %v430, %v429
        %vm436 = vsmask.f32 7424
        %v438 = vshrl.u32 %v431, 16
        %v440 = vshll.u32 %v431, 16
        %v442 = vrot.slane %v440, 1
        %v443 = vor.u32 %v438, %v442
        %v445 = vshll.u32 %v432, 16
        %v447 = vrot.slane %v445, 1
        %v448 = vsel %vm436, %v443, %v447
        %v449 = vshrl.u32 %v432, 16
        %v451 = vor.u32 %v449, %v447
        %v453 = vshll.u32 %v433, 16
        %v455 = vrot.slane %v453, 1
        %v456 = vsel %vm436, %v451, %v455
        %v457 = vshrl.u32 %v433, 16
        %v459 = vor.u32 %v457, %v455
        %v461 = vshll.u32 %v434, 16
        %v463 = vrot.slane %v461, 1
        %v464 = vsel %vm436, %v459, %v463
        %v465 = vshrl.u32 %v434, 16
        %v467 = vor.u32 %v465, %v463
        %v469 = vshll.u32 %v435, 16
        %v471 = vrot.slane %v469, 1
        %v472 = vsel %vm436, %v467, %v471
        %v473 = vshrl.u32 %v435, 16
        %v475 = vor.u32 %v473, %v471
        %v497 = vunpack.c.l.b16 %v395
        %v498 = vunpack.c.l.b16 %v396
        %v499 = vunpack.c.l.b16 %v397
        %v500 = vunpack.c.l.b16 %v398
        %v501 = vunpack.c.l.b16 %v399
        %v502 = vunpack.c.l.b16 %v400
        %v503 = vunpack.c.l.b16 %v401
        %v504 = vunpack.c.l.b16 %v402
        %v505 = vunpack.c.l.b16 %v403
        %v506 = vunpack.c.l.b16 %v404
        %v507 = vunpack.c.l.b16 %v405
        %v508 = vunpack.c.l.b16 %v406
        %v509 = vunpack.c.l.b16 %v407
        %v510 = vunpack.c.l.b16 %v408
        %v511 = vunpack.c.l.b16 %v409
        %v512 = vunpack.c.l.b16 %v410
        %v513 = vpack.c.b16 %v498, %v497
        %v514 = vpack.c.b16 %v500, %v499
        %v515 = vpack.c.b16 %v502, %v501
        %v516 = vpack.c.b16 %v504, %v503
        %v517 = vpack.c.b16 %v506, %v505
        %v518 = vpack.c.b16 %v508, %v507
        %v519 = vpack.c.b16 %v510, %v509
        %v520 = vpack.c.b16 %v512, %v511
        %529 = vmatprep.subr.bf16.mxu0 0
        %530 = vmatpush1.bf16.msra.mxu0 %v513
        %531 = vmatprep.subr.bf16.mxu0 0
        %532 = vmatpush1.bf16.msra.mxu0 %v514
        %533 = vmatprep.subr.bf16.mxu0 0
        %534 = vmatpush1.bf16.msra.mxu0 %v515
        %535 = vmatprep.subr.bf16.mxu0 0
        %536 = vmatpush1.bf16.msra.mxu0 %v516
        %537 = vmatprep.subr.bf16.mxu0 0
        %538 = vmatpush1.bf16.msra.mxu0 %v517
        %539 = vmatprep.subr.bf16.mxu0 0
        %540 = vmatpush1.bf16.msra.mxu0 %v518
        %541 = vmatprep.subr.bf16.mxu0 0
        %542 = vmatpush1.bf16.msra.mxu0 %v519
        %543 = vmatprep.subr.bf16.mxu0 0
        %544 = vmatpush1.bf16.msra.mxu0 %v520
        %545 = vmatprep.subr.bf16.mxu0 0
        %546 = vmatpush1.bf16.msra.mxu0 0
        %547 = vmatprep.subr.bf16.mxu0 0
        %548 = vmatpush1.bf16.msra.mxu0 0
        %549 = vmatprep.subr.bf16.mxu0 0
        %550 = vmatpush1.bf16.msra.mxu0 0
        %551 = vmatprep.subr.bf16.mxu0 0
        %552 = vmatpush1.bf16.msra.mxu0 0
        %553 = vmatprep.subr.bf16.mxu0 0
        %554 = vmatpush1.bf16.msra.mxu0 0
        %555 = vmatprep.subr.bf16.mxu0 0
        %556 = vmatpush1.bf16.msra.mxu0 0
        %557 = vmatprep.subr.bf16.mxu0 0
        %558 = vmatpush1.bf16.msra.mxu0 0
        %559 = vmatprep.subr.bf16.mxu0 0
        %560 = vmatpush1.bf16.msra.mxu0 0
        %561 = vmatprep.mubr.bf16.mxu0 0
        %562 = vmatmul.mubr.bf16.gmra.mrb[0].mxu0 %v448
        %v563 = vpop.f32.mrb[0].mxu0
        %v564 = vadd.f32 0.0, %v563
        %v565 = vpop.f32.mrb[0].mxu0
        %v566 = vpop.f32.mrb[0].mxu0
        %v567 = vadd.f32 0.0, %v566
        %v568 = vpop.f32.mrb[0].mxu0
        %569 = vmatprep.mubr.bf16.mxu0 0
        %570 = vmatmul.mubr.bf16.gmra.mrb[0].mxu0 %v456
        %v571 = vpop.f32.mrb[0].mxu0
        %v572 = vadd.f32 0.0, %v571
        %v573 = vpop.f32.mrb[0].mxu0
        %v574 = vpop.f32.mrb[0].mxu0
        %v575 = vadd.f32 0.0, %v574
        %v576 = vpop.f32.mrb[0].mxu0
        %577 = vmatprep.mubr.bf16.mxu0 0
        %578 = vmatmul.mubr.bf16.gmra.mrb[0].mxu0 %v464
        %v579 = vpop.f32.mrb[0].mxu0
        %v580 = vadd.f32 0.0, %v579
        %v581 = vpop.f32.mrb[0].mxu0
        %v582 = vpop.f32.mrb[0].mxu0
        %v583 = vadd.f32 0.0, %v582
        %v584 = vpop.f32.mrb[0].mxu0
        %585 = vmatprep.mubr.bf16.mxu0 0
        %586 = vmatmul.mubr.bf16.gmra.mrb[0].mxu0 %v472
        %v587 = vpop.f32.mrb[0].mxu0
        %v588 = vadd.f32 0.0, %v587
        %v589 = vpop.f32.mrb[0].mxu0
        %v590 = vpop.f32.mrb[0].mxu0
        %v591 = vadd.f32 0.0, %v590
        %v592 = vpop.f32.mrb[0].mxu0
        %593 = vmatprep.mubr.bf16.mxu0 0
        %594 = vmatmul.mubr.bf16.gmra.mrb[0].mxu0 %v475
        %v595 = vpop.f32.mrb[0].mxu0
        %v596 = vadd.f32 0.0, %v595
        %v597 = vpop.f32.mrb[0].mxu0
        %v598 = vpop.f32.mrb[0].mxu0
        %v599 = vadd.f32 0.0, %v598
        %v600 = vpop.f32.mrb[0].mxu0
        %601 = vdwg.mxu0
        %v603 = vunpack.c.l.b16 %v376
        %v604 = vpack.c.b16 %v603, %v429
        %v626 = vunpack.c.l.b16 %v377
        %v627 = vunpack.c.l.b16 %v378
        %v628 = vunpack.c.l.b16 %v379
        %v629 = vunpack.c.l.b16 %v380
        %v630 = vunpack.c.l.b16 %v381
        %v631 = vunpack.c.l.b16 %v382
        %v632 = vunpack.c.l.b16 %v383
        %v633 = vunpack.c.l.b16 %v384
        %v634 = vunpack.c.l.b16 %v385
        %v635 = vunpack.c.l.b16 %v386
        %v636 = vunpack.c.l.b16 %v387
        %v637 = vunpack.c.l.b16 %v388
        %v638 = vunpack.c.l.b16 %v389
        %v639 = vunpack.c.l.b16 %v390
        %v640 = vunpack.c.l.b16 %v391
        %v641 = vunpack.c.l.b16 %v392
        %v642 = vpack.c.b16 %v627, %v626
        %v643 = vpack.c.b16 %v629, %v628
        %v644 = vpack.c.b16 %v631, %v630
        %v645 = vpack.c.b16 %v633, %v632
        %v646 = vpack.c.b16 %v635, %v634
        %v647 = vpack.c.b16 %v637, %v636
        %v648 = vpack.c.b16 %v639, %v638
        %v649 = vpack.c.b16 %v641, %v640
        %658 = vmatprep.subr.bf16.mxu0 0
        %659 = vmatpush1.bf16.msra.mxu0 %v642
        %660 = vmatprep.subr.bf16.mxu0 0
        %661 = vmatpush1.bf16.msra.mxu0 %v643
        %662 = vmatprep.subr.bf16.mxu0 0
        %663 = vmatpush1.bf16.msra.mxu0 %v644
        %664 = vmatprep.subr.bf16.mxu0 0
        %665 = vmatpush1.bf16.msra.mxu0 %v645
        %666 = vmatprep.subr.bf16.mxu0 0
        %667 = vmatpush1.bf16.msra.mxu0 %v646
        %668 = vmatprep.subr.bf16.mxu0 0
        %669 = vmatpush1.bf16.msra.mxu0 %v647
        %670 = vmatprep.subr.bf16.mxu0 0
        %671 = vmatpush1.bf16.msra.mxu0 %v648
        %672 = vmatprep.subr.bf16.mxu0 0
        %673 = vmatpush1.bf16.msra.mxu0 %v649
        %674 = vmatprep.subr.bf16.mxu0 0
        %675 = vmatpush1.bf16.msra.mxu0 0
        %676 = vmatprep.subr.bf16.mxu0 0
        %677 = vmatpush1.bf16.msra.mxu0 0
        %678 = vmatprep.subr.bf16.mxu0 0
        %679 = vmatpush1.bf16.msra.mxu0 0
        %680 = vmatprep.subr.bf16.mxu0 0
        %681 = vmatpush1.bf16.msra.mxu0 0
        %682 = vmatprep.subr.bf16.mxu0 0
        %683 = vmatpush1.bf16.msra.mxu0 0
        %684 = vmatprep.subr.bf16.mxu0 0
        %685 = vmatpush1.bf16.msra.mxu0 0
        %686 = vmatprep.subr.bf16.mxu0 0
        %687 = vmatpush1.bf16.msra.mxu0 0
        %688 = vmatprep.subr.bf16.mxu0 0
        %689 = vmatpush1.bf16.msra.mxu0 0
        %690 = vmatprep.mubr.bf16.mxu0 0
        %691 = vmatmul.mubr.bf16.gmra.mrb[0].mxu0 %v431
        %v692 = vpop.f32.mrb[0].mxu0
        %v693 = vadd.f32 %v564, %v692
        %v694 = vpop.f32.mrb[0].mxu0
        %v695 = vpop.f32.mrb[0].mxu0
        %v696 = vadd.f32 %v567, %v695
        %v697 = vpop.f32.mrb[0].mxu0
        %698 = vmatprep.mubr.bf16.mxu0 0
        %699 = vmatmul.mubr.bf16.gmra.mrb[0].mxu0 %v432
        %v700 = vpop.f32.mrb[0].mxu0
        %v701 = vadd.f32 %v572, %v700
        %v702 = vpop.f32.mrb[0].mxu0
        %v703 = vpop.f32.mrb[0].mxu0
        %v704 = vadd.f32 %v575, %v703
        %v705 = vpop.f32.mrb[0].mxu0
        %706 = vmatprep.mubr.bf16.mxu0 0
        %707 = vmatmul.mubr.bf16.gmra.mrb[0].mxu0 %v433
        %v708 = vpop.f32.mrb[0].mxu0
        %v709 = vadd.f32 %v580, %v708
        %v710 = vpop.f32.mrb[0].mxu0
        %v711 = vpop.f32.mrb[0].mxu0
        %v712 = vadd.f32 %v583, %v711
        %v713 = vpop.f32.mrb[0].mxu0
        %714 = vmatprep.mubr.bf16.mxu0 0
        %715 = vmatmul.mubr.bf16.gmra.mrb[0].mxu0 %v434
        %v716 = vpop.f32.mrb[0].mxu0
        %v717 = vadd.f32 %v588, %v716
        %v718 = vpop.f32.mrb[0].mxu0
        %v719 = vpop.f32.mrb[0].mxu0
        %v720 = vadd.f32 %v591, %v719
        %v721 = vpop.f32.mrb[0].mxu0
        %722 = vmatprep.mubr.bf16.mxu0 0
        %723 = vmatmul.mubr.bf16.gmra.mrb[0].mxu0 %v604
        %v724 = vpop.f32.mrb[0].mxu0
        %v725 = vadd.f32 %v596, %v724
        %v726 = vpop.f32.mrb[0].mxu0
        %v727 = vpop.f32.mrb[0].mxu0
        %v728 = vadd.f32 %v599, %v727
        %v729 = vpop.f32.mrb[0].mxu0
        %730 = vdwg.mxu0
        %v731 = vld [vmem:[%s318] sm:$0xe]
        %s732 = scalar_lea.vmem %s326, 128 [#allocation3]
        %v733 = vld [vmem:[%s732] sm:$0xf]
        %v734 = vld [vmem:[%s732 + $0x4] sm:$0xf]
        %v735 = vld [vmem:[%s732 + $0x8] sm:$0xf]
        %v736 = vld [vmem:[%s732 + $0xc] sm:$0xf]
        %v737 = vld [vmem:[%s732 + $0x10] sm:$0xf]
        %v738 = vld [vmem:[%s732 + $0x14] sm:$0xf]
        %v739 = vld [vmem:[%s732 + $0x18] sm:$0xf]
        %v740 = vld [vmem:[%s732 + $0x1c] sm:$0xf]
        %v741 = vld [vmem:[%s732 + $0x20] sm:$0xf]
        %v742 = vld [vmem:[%s732 + $0x24] sm:$0xf]
        %v743 = vld [vmem:[%s732 + $0x28] sm:$0xf]
        %v744 = vld [vmem:[%s732 + $0x2c] sm:$0xf]
        %v745 = vld [vmem:[%s732 + $0x30] sm:$0xf]
        %v746 = vld [vmem:[%s732 + $0x34] sm:$0xf]
        %v747 = vld [vmem:[%s732 + $0x38] sm:$0xf]
        %v748 = vld [vmem:[%s732 + $0x3c] sm:$0xf]
        %v750 = vunpack.c.l.b16 %v731
        %v751 = vpack.c.b16 %v422, %v750
        %vm752 = vcmask 1046528
        %v753 = vrot.slane %v751, 1
        %v754 = vrot.slane %v432, 1
        %v755 = vsel %vm752, %v753, %v754
        %v756 = vrot.slane %v433, 1
        %v757 = vsel %vm752, %v754, %v756
        %v758 = vrot.slane %v434, 1
        %v759 = vsel %vm752, %v756, %v758
        %v760 = vrot.slane %v435, 1
        %v761 = vsel %vm752, %v758, %v760
        %v783 = vunpack.c.l.b16 %v733
        %v784 = vunpack.c.l.b16 %v734
        %v785 = vunpack.c.l.b16 %v735
        %v786 = vunpack.c.l.b16 %v736
        %v787 = vunpack.c.l.b16 %v737
        %v788 = vunpack.c.l.b16 %v738
        %v789 = vunpack.c.l.b16 %v739
        %v790 = vunpack.c.l.b16 %v740
        %v791 = vunpack.c.l.b16 %v741
        %v792 = vunpack.c.l.b16 %v742
        %v793 = vunpack.c.l.b16 %v743
        %v794 = vunpack.c.l.b16 %v744
        %v795 = vunpack.c.l.b16 %v745
        %v796 = vunpack.c.l.b16 %v746
        %v797 = vunpack.c.l.b16 %v747
        %v798 = vunpack.c.l.b16 %v748
        %v799 = vpack.c.b16 %v784, %v783
        %v800 = vpack.c.b16 %v786, %v785
        %v801 = vpack.c.b16 %v788, %v787
        %v802 = vpack.c.b16 %v790, %v789
        %v803 = vpack.c.b16 %v792, %v791
        %v804 = vpack.c.b16 %v794, %v793
        %v805 = vpack.c.b16 %v796, %v795
        %v806 = vpack.c.b16 %v798, %v797
        %815 = vmatprep.subr.bf16.mxu0 0
        %816 = vmatpush1.bf16.msra.mxu0 %v799
        %817 = vmatprep.subr.bf16.mxu0 0
        %818 = vmatpush1.bf16.msra.mxu0 %v800
        %819 = vmatprep.subr.bf16.mxu0 0
        %820 = vmatpush1.bf16.msra.mxu0 %v801
        %821 = vmatprep.subr.bf16.mxu0 0
        %822 = vmatpush1.bf16.msra.mxu0 %v802
        %823 = vmatprep.subr.bf16.mxu0 0
        %824 = vmatpush1.bf16.msra.mxu0 %v803
        %825 = vmatprep.subr.bf16.mxu0 0
        %826 = vmatpush1.bf16.msra.mxu0 %v804
        %827 = vmatprep.subr.bf16.mxu0 0
        %828 = vmatpush1.bf16.msra.mxu0 %v805
        %829 = vmatprep.subr.bf16.mxu0 0
        %830 = vmatpush1.bf16.msra.mxu0 %v806
        %831 = vmatprep.subr.bf16.mxu0 0
        %832 = vmatpush1.bf16.msra.mxu0 0
        %833 = vmatprep.subr.bf16.mxu0 0
        %834 = vmatpush1.bf16.msra.mxu0 0
        %835 = vmatprep.subr.bf16.mxu0 0
        %836 = vmatpush1.bf16.msra.mxu0 0
        %837 = vmatprep.subr.bf16.mxu0 0
        %838 = vmatpush1.bf16.msra.mxu0 0
        %839 = vmatprep.subr.bf16.mxu0 0
        %840 = vmatpush1.bf16.msra.mxu0 0
        %841 = vmatprep.subr.bf16.mxu0 0
        %842 = vmatpush1.bf16.msra.mxu0 0
        %843 = vmatprep.subr.bf16.mxu0 0
        %844 = vmatpush1.bf16.msra.mxu0 0
        %845 = vmatprep.subr.bf16.mxu0 0
        %846 = vmatpush1.bf16.msra.mxu0 0
        %847 = vmatprep.mubr.bf16.mxu0 0
        %848 = vmatmul.mubr.bf16.gmra.mrb[0].mxu0 %v755
        %v849 = vpop.f32.mrb[0].mxu0
        %v850 = vadd.f32 0.0, %v849
        %v851 = vpop.f32.mrb[0].mxu0
        %v852 = vpop.f32.mrb[0].mxu0
        %v853 = vadd.f32 0.0, %v852
        %v854 = vpop.f32.mrb[0].mxu0
        %855 = vmatprep.mubr.bf16.mxu0 0
        %856 = vmatmul.mubr.bf16.gmra.mrb[0].mxu0 %v757
        %v857 = vpop.f32.mrb[0].mxu0
        %v858 = vadd.f32 0.0, %v857
        %v859 = vpop.f32.mrb[0].mxu0
        %v860 = vpop.f32.mrb[0].mxu0
        %v861 = vadd.f32 0.0, %v860
        %v862 = vpop.f32.mrb[0].mxu0
        %863 = vmatprep.mubr.bf16.mxu0 0
        %864 = vmatmul.mubr.bf16.gmra.mrb[0].mxu0 %v759
        %v865 = vpop.f32.mrb[0].mxu0
        %v866 = vadd.f32 0.0, %v865
        %v867 = vpop.f32.mrb[0].mxu0
        %v868 = vpop.f32.mrb[0].mxu0
        %v869 = vadd.f32 0.0, %v868
        %v870 = vpop.f32.mrb[0].mxu0
        %871 = vmatprep.mubr.bf16.mxu0 0
        %872 = vmatmul.mubr.bf16.gmra.mrb[0].mxu0 %v761
        %v873 = vpop.f32.mrb[0].mxu0
        %v874 = vadd.f32 0.0, %v873
        %v875 = vpop.f32.mrb[0].mxu0
        %v876 = vpop.f32.mrb[0].mxu0
        %v877 = vadd.f32 0.0, %v876
        %v878 = vpop.f32.mrb[0].mxu0
        %879 = vmatprep.mubr.bf16.mxu0 0
        %880 = vmatmul.mubr.bf16.gmra.mrb[0].mxu0 %v760
        %v881 = vpop.f32.mrb[0].mxu0
        %v882 = vadd.f32 0.0, %v881
        %v883 = vpop.f32.mrb[0].mxu0
        %v884 = vpop.f32.mrb[0].mxu0
        %v885 = vadd.f32 0.0, %v884
        %v886 = vpop.f32.mrb[0].mxu0
        %887 = vdwg.mxu0
        %v888 = vadd.f32 %v693, %v850
        %v889 = vadd.f32 %v696, %v853
        %v890 = vadd.f32 %v701, %v858
        %v891 = vadd.f32 %v704, %v861
        %v892 = vadd.f32 %v709, %v866
        %v893 = vadd.f32 %v712, %v869
        %v894 = vadd.f32 %v717, %v874
        %v895 = vadd.f32 %v720, %v877
        %v896 = vadd.f32 %v725, %v882
        %v897 = vadd.f32 %v728, %v885
        %v898 = vld [vmem:[%s318 + $0x4] sm:$0xe]
        %v899 = vld [vmem:[%s318 + $0x8] sm:$0xf]
        %v900 = vld [vmem:[%s318 + $0xc] sm:$0xf]
        %v901 = vld [vmem:[%s318 + $0x10] sm:$0xf]
        %v902 = vld [vmem:[%s318 + $0x14] sm:$0xf]
        %v903 = vld [vmem:[%s318 + $0x18] sm:$0xf]
        %v904 = vld [vmem:[%s318 + $0x1c] sm:$0xf]
        %v905 = vld [vmem:[%s318 + $0x20] sm:$0xf]
        %v906 = vld [vmem:[%s318 + $0x24] sm:$0xf]
        %v907 = vld [vmem:[%s318 + $0x28] sm:$0xf]
        %s908 = scalar_lea.vmem %s326, 192 [#allocation3]
        %v909 = vld [vmem:[%s908] sm:$0xf]
        %v910 = vld [vmem:[%s908 + $0x4] sm:$0xf]
        %v911 = vld [vmem:[%s908 + $0x8] sm:$0xf]
        %v912 = vld [vmem:[%s908 + $0xc] sm:$0xf]
        %v913 = vld [vmem:[%s908 + $0x10] sm:$0xf]
        %v914 = vld [vmem:[%s908 + $0x14] sm:$0xf]
        %v915 = vld [vmem:[%s908 + $0x18] sm:$0xf]
        %v916 = vld [vmem:[%s908 + $0x1c] sm:$0xf]
        %v917 = vld [vmem:[%s908 + $0x20] sm:$0xf]
        %v918 = vld [vmem:[%s908 + $0x24] sm:$0xf]
        %v919 = vld [vmem:[%s908 + $0x28] sm:$0xf]
        %v920 = vld [vmem:[%s908 + $0x2c] sm:$0xf]
        %v921 = vld [vmem:[%s908 + $0x30] sm:$0xf]
        %v922 = vld [vmem:[%s908 + $0x34] sm:$0xf]
        %v923 = vld [vmem:[%s908 + $0x38] sm:$0xf]
        %v924 = vld [vmem:[%s908 + $0x3c] sm:$0xf]
        %v935 = vunpack.c.l.b16 %v898
        %v936 = vunpack.c.l.b16 %v899
        %v937 = vunpack.c.l.b16 %v900
        %v938 = vunpack.c.l.b16 %v901
        %v939 = vunpack.c.l.b16 %v902
        %v940 = vunpack.c.l.b16 %v903
        %v941 = vunpack.c.l.b16 %v904
        %v942 = vunpack.c.l.b16 %v905
        %v943 = vunpack.c.l.b16 %v906
        %v944 = vunpack.c.l.b16 %v907
        %v945 = vpack.c.b16 %v936, %v935
        %v946 = vpack.c.b16 %v938, %v937
        %v947 = vpack.c.b16 %v940, %v939
        %v948 = vpack.c.b16 %v942, %v941
        %v949 = vpack.c.b16 %v944, %v943
        %v950 = vrot.slane %v945, 1
        %v951 = vrot.slane %v946, 1
        %v952 = vsel %vm752, %v950, %v951
        %v953 = vrot.slane %v947, 1
        %v954 = vsel %vm752, %v951, %v953
        %v955 = vrot.slane %v948, 1
        %v956 = vsel %vm752, %v953, %v955
        %v957 = vrot.slane %v949, 1
        %v958 = vsel %vm752, %v955, %v957
        %v980 = vunpack.c.l.b16 %v909
        %v981 = vunpack.c.l.b16 %v910
        %v982 = vunpack.c.l.b16 %v911
        %v983 = vunpack.c.l.b16 %v912
        %v984 = vunpack.c.l.b16 %v913
        %v985 = vunpack.c.l.b16 %v914
        %v986 = vunpack.c.l.b16 %v915
        %v987 = vunpack.c.l.b16 %v916
        %v988 = vunpack.c.l.b16 %v917
        %v989 = vunpack.c.l.b16 %v918
        %v990 = vunpack.c.l.b16 %v919
        %v991 = vunpack.c.l.b16 %v920
        %v992 = vunpack.c.l.b16 %v921
        %v993 = vunpack.c.l.b16 %v922
        %v994 = vunpack.c.l.b16 %v923
        %v995 = vunpack.c.l.b16 %v924
        %v996 = vpack.c.b16 %v981, %v980
        %v997 = vpack.c.b16 %v983, %v982
        %v998 = vpack.c.b16 %v985, %v984
        %v999 = vpack.c.b16 %v987, %v986
        %v1000 = vpack.c.b16 %v989, %v988
        %v1001 = vpack.c.b16 %v991, %v990
        %v1002 = vpack.c.b16 %v993, %v992
        %v1003 = vpack.c.b16 %v995, %v994
        %1012 = vmatprep.subr.bf16.mxu0 0
        %1013 = vmatpush1.bf16.msra.mxu0 %v996
        %1014 = vmatprep.subr.bf16.mxu0 0
        %1015 = vmatpush1.bf16.msra.mxu0 %v997
        %1016 = vmatprep.subr.bf16.mxu0 0
        %1017 = vmatpush1.bf16.msra.mxu0 %v998
        %1018 = vmatprep.subr.bf16.mxu0 0
        %1019 = vmatpush1.bf16.msra.mxu0 %v999
        %1020 = vmatprep.subr.bf16.mxu0 0
        %1021 = vmatpush1.bf16.msra.mxu0 %v1000
        %1022 = vmatprep.subr.bf16.mxu0 0
        %1023 = vmatpush1.bf16.msra.mxu0 %v1001
        %1024 = vmatprep.subr.bf16.mxu0 0
        %1025 = vmatpush1.bf16.msra.mxu0 %v1002
        %1026 = vmatprep.subr.bf16.mxu0 0
        %1027 = vmatpush1.bf16.msra.mxu0 %v1003
        %1028 = vmatprep.subr.bf16.mxu0 0
        %1029 = vmatpush1.bf16.msra.mxu0 0
        %1030 = vmatprep.subr.bf16.mxu0 0
        %1031 = vmatpush1.bf16.msra.mxu0 0
        %1032 = vmatprep.subr.bf16.mxu0 0
        %1033 = vmatpush1.bf16.msra.mxu0 0
        %1034 = vmatprep.subr.bf16.mxu0 0
        %1035 = vmatpush1.bf16.msra.mxu0 0
        %1036 = vmatprep.subr.bf16.mxu0 0
        %1037 = vmatpush1.bf16.msra.mxu0 0
        %1038 = vmatprep.subr.bf16.mxu0 0
        %1039 = vmatpush1.bf16.msra.mxu0 0
        %1040 = vmatprep.subr.bf16.mxu0 0
        %1041 = vmatpush1.bf16.msra.mxu0 0
        %1042 = vmatprep.subr.bf16.mxu0 0
        %1043 = vmatpush1.bf16.msra.mxu0 0
        %1044 = vmatprep.mubr.bf16.mxu0 0
        %1045 = vmatmul.mubr.bf16.gmra.mrb[0].mxu0 %v952
        %v1046 = vpop.f32.mrb[0].mxu0
        %v1047 = vadd.f32 0.0, %v1046
        %v1048 = vpop.f32.mrb[0].mxu0
        %v1049 = vpop.f32.mrb[0].mxu0
        %v1050 = vadd.f32 0.0, %v1049
        %v1051 = vpop.f32.mrb[0].mxu0
        %1052 = vmatprep.mubr.bf16.mxu0 0
        %1053 = vmatmul.mubr.bf16.gmra.mrb[0].mxu0 %v954
        %v1054 = vpop.f32.mrb[0].mxu0
        %v1055 = vadd.f32 0.0, %v1054
        %v1056 = vpop.f32.mrb[0].mxu0
        %v1057 = vpop.f32.mrb[0].mxu0
        %v1058 = vadd.f32 0.0, %v1057
        %v1059 = vpop.f32.mrb[0].mxu0
        %1060 = vmatprep.mubr.bf16.mxu0 0
        %1061 = vmatmul.mubr.bf16.gmra.mrb[0].mxu0 %v956
        %v1062 = vpop.f32.mrb[0].mxu0
        %v1063 = vadd.f32 0.0, %v1062
        %v1064 = vpop.f32.mrb[0].mxu0
        %v1065 = vpop.f32.mrb[0].mxu0
        %v1066 = vadd.f32 0.0, %v1065
        %v1067 = vpop.f32.mrb[0].mxu0
        %1068 = vmatprep.mubr.bf16.mxu0 0
        %1069 = vmatmul.mubr.bf16.gmra.mrb[0].mxu0 %v958
        %v1070 = vpop.f32.mrb[0].mxu0
        %v1071 = vadd.f32 0.0, %v1070
        %v1072 = vpop.f32.mrb[0].mxu0
        %v1073 = vpop.f32.mrb[0].mxu0
        %v1074 = vadd.f32 0.0, %v1073
        %v1075 = vpop.f32.mrb[0].mxu0
        %1076 = vmatprep.mubr.bf16.mxu0 0
        %1077 = vmatmul.mubr.bf16.gmra.mrb[0].mxu0 %v957
        %v1078 = vpop.f32.mrb[0].mxu0
        %v1079 = vadd.f32 0.0, %v1078
        %v1080 = vpop.f32.mrb[0].mxu0
        %v1081 = vpop.f32.mrb[0].mxu0
        %v1082 = vadd.f32 0.0, %v1081
        %v1083 = vpop.f32.mrb[0].mxu0
        %1084 = vdwg.mxu0
        %v1085 = vadd.f32 %v888, %v1047
        %v1086 = vadd.f32 %v889, %v1050
        %v1087 = vadd.f32 %v890, %v1055
        %v1088 = vadd.f32 %v891, %v1058
        %v1089 = vadd.f32 %v892, %v1063
        %v1090 = vadd.f32 %v893, %v1066
        %v1091 = vadd.f32 %v894, %v1071
        %v1092 = vadd.f32 %v895, %v1074
        %v1093 = vadd.f32 %v896, %v1079
        %v1094 = vadd.f32 %v897, %v1082
        %v1095 = vld [vmem:[%s318 + $0x4] sm:$0xe]
        %v1096 = vld [vmem:[%s318 + $0x8] sm:$0xf]
        %v1097 = vld [vmem:[%s318 + $0xc] sm:$0xf]
        %v1098 = vld [vmem:[%s318 + $0x10] sm:$0xf]
        %v1099 = vld [vmem:[%s318 + $0x14] sm:$0xf]
        %v1100 = vld [vmem:[%s318 + $0x18] sm:$0xf]
        %v1101 = vld [vmem:[%s318 + $0x1c] sm:$0xf]
        %v1102 = vld [vmem:[%s318 + $0x20] sm:$0xf]
        %v1103 = vld [vmem:[%s318 + $0x24] sm:$0xf]
        %v1104 = vld [vmem:[%s318 + $0x28] sm:$0xf]
        %v1105 = vld [vmem:[%s318 + $0x2c] sm:$0x1]
        %s1106 = scalar_lea.vmem %s326, 256 [#allocation3]
        %v1107 = vld [vmem:[%s1106] sm:$0xf]
        %v1108 = vld [vmem:[%s1106 + $0x4] sm:$0xf]
        %v1109 = vld [vmem:[%s1106 + $0x8] sm:$0xf]
        %v1110 = vld [vmem:[%s1106 + $0xc] sm:$0xf]
        %v1111 = vld [vmem:[%s1106 + $0x10] sm:$0xf]
        %v1112 = vld [vmem:[%s1106 + $0x14] sm:$0xf]
        %v1113 = vld [vmem:[%s1106 + $0x18] sm:$0xf]
        %v1114 = vld [vmem:[%s1106 + $0x1c] sm:$0xf]
        %v1115 = vld [vmem:[%s1106 + $0x20] sm:$0xf]
        %v1116 = vld [vmem:[%s1106 + $0x24] sm:$0xf]
        %v1117 = vld [vmem:[%s1106 + $0x28] sm:$0xf]
        %v1118 = vld [vmem:[%s1106 + $0x2c] sm:$0xf]
        %v1119 = vld [vmem:[%s1106 + $0x30] sm:$0xf]
        %v1120 = vld [vmem:[%s1106 + $0x34] sm:$0xf]
        %v1121 = vld [vmem:[%s1106 + $0x38] sm:$0xf]
        %v1122 = vld [vmem:[%s1106 + $0x3c] sm:$0xf]
        %v1134 = vunpack.c.l.b16 %v1095
        %v1135 = vunpack.c.l.b16 %v1096
        %v1136 = vunpack.c.l.b16 %v1097
        %v1137 = vunpack.c.l.b16 %v1098
        %v1138 = vunpack.c.l.b16 %v1099
        %v1139 = vunpack.c.l.b16 %v1100
        %v1140 = vunpack.c.l.b16 %v1101
        %v1141 = vunpack.c.l.b16 %v1102
        %v1142 = vunpack.c.l.b16 %v1103
        %v1143 = vunpack.c.l.b16 %v1104
        %v1144 = vunpack.c.l.b16 %v1105
        %v1145 = vpack.c.b16 %v1135, %v1134
        %v1146 = vpack.c.b16 %v1137, %v1136
        %v1147 = vpack.c.b16 %v1139, %v1138
        %v1148 = vpack.c.b16 %v1141, %v1140
        %v1149 = vpack.c.b16 %v1143, %v1142
        %v1150 = vpack.c.b16 %v1144, %v1144
        %vm1151 = vsmask.f32 6400
        %v1153 = vshrl.u32 %v1145, 16
        %v1155 = vrot.slane %v1153, 1
        %v1156 = vshll.u32 %v1145, 16
        %v1158 = vrot.slane %v1156, 2
        %v1159 = vor.u32 %v1155, %v1158
        %v1161 = vshrl.u32 %v1146, 16
        %v1163 = vrot.slane %v1161, 1
        %v1164 = vshll.u32 %v1146, 16
        %v1166 = vrot.slane %v1164, 2
        %v1167 = vor.u32 %v1163, %v1166
        %v1168 = vsel %vm1151, %v1159, %v1167
        %v1170 = vshrl.u32 %v1147, 16
        %v1172 = vrot.slane %v1170, 1
        %v1173 = vshll.u32 %v1147, 16
        %v1175 = vrot.slane %v1173, 2
        %v1176 = vor.u32 %v1172, %v1175
        %v1177 = vsel %vm1151, %v1167, %v1176
        %v1179 = vshrl.u32 %v1148, 16
        %v1181 = vrot.slane %v1179, 1
        %v1182 = vshll.u32 %v1148, 16
        %v1184 = vrot.slane %v1182, 2
        %v1185 = vor.u32 %v1181, %v1184
        %v1186 = vsel %vm1151, %v1176, %v1185
        %v1188 = vshrl.u32 %v1149, 16
        %v1190 = vrot.slane %v1188, 1
        %v1191 = vshll.u32 %v1149, 16
        %v1193 = vrot.slane %v1191, 2
        %v1194 = vor.u32 %v1190, %v1193
        %v1195 = vsel %vm1151, %v1185, %v1194
        %v1197 = vshll.u32 %v1150, 16
        %v1199 = vrot.slane %v1197, 2
        %v1200 = vsel %vm1151, %v1194, %v1199
        %v1222 = vunpack.c.l.b16 %v1107
        %v1223 = vunpack.c.l.b16 %v1108
        %v1224 = vunpack.c.l.b16 %v1109
        %v1225 = vunpack.c.l.b16 %v1110
        %v1226 = vunpack.c.l.b16 %v1111
        %v1227 = vunpack.c.l.b16 %v1112
        %v1228 = vunpack.c.l.b16 %v1113
        %v1229 = vunpack.c.l.b16 %v1114
        %v1230 = vunpack.c.l.b16 %v1115
        %v1231 = vunpack.c.l.b16 %v1116
        %v1232 = vunpack.c.l.b16 %v1117
        %v1233 = vunpack.c.l.b16 %v1118
        %v1234 = vunpack.c.l.b16 %v1119
        %v1235 = vunpack.c.l.b16 %v1120
        %v1236 = vunpack.c.l.b16 %v1121
        %v1237 = vunpack.c.l.b16 %v1122
        %v1238 = vpack.c.b16 %v1223, %v1222
        %v1239 = vpack.c.b16 %v1225, %v1224
        %v1240 = vpack.c.b16 %v1227, %v1226
        %v1241 = vpack.c.b16 %v1229, %v1228
        %v1242 = vpack.c.b16 %v1231, %v1230
        %v1243 = vpack.c.b16 %v1233, %v1232
        %v1244 = vpack.c.b16 %v1235, %v1234
        %v1245 = vpack.c.b16 %v1237, %v1236
        %1254 = vmatprep.subr.bf16.mxu0 0
        %1255 = vmatpush1.bf16.msra.mxu0 %v1238
        %1256 = vmatprep.subr.bf16.mxu0 0
        %1257 = vmatpush1.bf16.msra.mxu0 %v1239
        %1258 = vmatprep.subr.bf16.mxu0 0
        %1259 = vmatpush1.bf16.msra.mxu0 %v1240
        %1260 = vmatprep.subr.bf16.mxu0 0
        %1261 = vmatpush1.bf16.msra.mxu0 %v1241
        %1262 = vmatprep.subr.bf16.mxu0 0
        %1263 = vmatpush1.bf16.msra.mxu0 %v1242
        %1264 = vmatprep.subr.bf16.mxu0 0
        %1265 = vmatpush1.bf16.msra.mxu0 %v1243
        %1266 = vmatprep.subr.bf16.mxu0 0
        %1267 = vmatpush1.bf16.msra.mxu0 %v1244
        %1268 = vmatprep.subr.bf16.mxu0 0
        %1269 = vmatpush1.bf16.msra.mxu0 %v1245
        %1270 = vmatprep.subr.bf16.mxu0 0
        %1271 = vmatpush1.bf16.msra.mxu0 0
        %1272 = vmatprep.subr.bf16.mxu0 0
        %1273 = vmatpush1.bf16.msra.mxu0 0
        %1274 = vmatprep.subr.bf16.mxu0 0
        %1275 = vmatpush1.bf16.msra.mxu0 0
        %1276 = vmatprep.subr.bf16.mxu0 0
        %1277 = vmatpush1.bf16.msra.mxu0 0
        %1278 = vmatprep.subr.bf16.mxu0 0
        %1279 = vmatpush1.bf16.msra.mxu0 0
        %1280 = vmatprep.subr.bf16.mxu0 0
        %1281 = vmatpush1.bf16.msra.mxu0 0
        %1282 = vmatprep.subr.bf16.mxu0 0
        %1283 = vmatpush1.bf16.msra.mxu0 0
        %1284 = vmatprep.subr.bf16.mxu0 0
        %1285 = vmatpush1.bf16.msra.mxu0 0
        %1286 = vmatprep.mubr.bf16.mxu0 0
        %1287 = vmatmul.mubr.bf16.gmra.mrb[0].mxu0 %v1168
        %v1288 = vpop.f32.mrb[0].mxu0
        %v1289 = vadd.f32 0.0, %v1288
        %v1290 = vpop.f32.mrb[0].mxu0
        %v1291 = vpop.f32.mrb[0].mxu0
        %v1292 = vadd.f32 0.0, %v1291
        %v1293 = vpop.f32.mrb[0].mxu0
        %1294 = vmatprep.mubr.bf16.mxu0 0
        %1295 = vmatmul.mubr.bf16.gmra.mrb[0].mxu0 %v1177
        %v1296 = vpop.f32.mrb[0].mxu0
        %v1297 = vadd.f32 0.0, %v1296
        %v1298 = vpop.f32.mrb[0].mxu0
        %v1299 = vpop.f32.mrb[0].mxu0
        %v1300 = vadd.f32 0.0, %v1299
        %v1301 = vpop.f32.mrb[0].mxu0
        %1302 = vmatprep.mubr.bf16.mxu0 0
        %1303 = vmatmul.mubr.bf16.gmra.mrb[0].mxu0 %v1186
        %v1304 = vpop.f32.mrb[0].mxu0
        %v1305 = vadd.f32 0.0, %v1304
        %v1306 = vpop.f32.mrb[0].mxu0
        %v1307 = vpop.f32.mrb[0].mxu0
        %v1308 = vadd.f32 0.0, %v1307
        %v1309 = vpop.f32.mrb[0].mxu0
        %1310 = vmatprep.mubr.bf16.mxu0 0
        %1311 = vmatmul.mubr.bf16.gmra.mrb[0].mxu0 %v1195
        %v1312 = vpop.f32.mrb[0].mxu0
        %v1313 = vadd.f32 0.0, %v1312
        %v1314 = vpop.f32.mrb[0].mxu0
        %v1315 = vpop.f32.mrb[0].mxu0
        %v1316 = vadd.f32 0.0, %v1315
        %v1317 = vpop.f32.mrb[0].mxu0
        %1318 = vmatprep.mubr.bf16.mxu0 0
        %1319 = vmatmul.mubr.bf16.gmra.mrb[0].mxu0 %v1200
        %v1320 = vpop.f32.mrb[0].mxu0
        %v1321 = vadd.f32 0.0, %v1320
        %v1322 = vpop.f32.mrb[0].mxu0
        %v1323 = vpop.f32.mrb[0].mxu0
        %v1324 = vadd.f32 0.0, %v1323
        %v1325 = vpop.f32.mrb[0].mxu0
        %1326 = vdwg.mxu0
        %v1327 = vadd.f32 %v1085, %v1289
        %v1328 = vadd.f32 %v1086, %v1292
        %v1329 = vadd.f32 %v1087, %v1297
        %v1330 = vadd.f32 %v1088, %v1300
        %v1331 = vadd.f32 %v1089, %v1305
        %v1332 = vadd.f32 %v1090, %v1308
        %v1333 = vadd.f32 %v1091, %v1313
        %v1334 = vadd.f32 %v1092, %v1316
        %v1335 = vadd.f32 %v1093, %v1321
        %v1336 = vadd.f32 %v1094, %v1324
        %v1337 = vld [vmem:[%s318 + $0x4] sm:$0xc]
        %s1338 = scalar_lea.vmem %s326, 320 [#allocation3]
        %v1339 = vld [vmem:[%s1338] sm:$0xf]
        %v1340 = vld [vmem:[%s1338 + $0x4] sm:$0xf]
        %v1341 = vld [vmem:[%s1338 + $0x8] sm:$0xf]
        %v1342 = vld [vmem:[%s1338 + $0xc] sm:$0xf]
        %v1343 = vld [vmem:[%s1338 + $0x10] sm:$0xf]
        %v1344 = vld [vmem:[%s1338 + $0x14] sm:$0xf]
        %v1345 = vld [vmem:[%s1338 + $0x18] sm:$0xf]
        %v1346 = vld [vmem:[%s1338 + $0x1c] sm:$0xf]
        %v1347 = vld [vmem:[%s1338 + $0x20] sm:$0xf]
        %v1348 = vld [vmem:[%s1338 + $0x24] sm:$0xf]
        %v1349 = vld [vmem:[%s1338 + $0x28] sm:$0xf]
        %v1350 = vld [vmem:[%s1338 + $0x2c] sm:$0xf]
        %v1351 = vld [vmem:[%s1338 + $0x30] sm:$0xf]
        %v1352 = vld [vmem:[%s1338 + $0x34] sm:$0xf]
        %v1353 = vld [vmem:[%s1338 + $0x38] sm:$0xf]
        %v1354 = vld [vmem:[%s1338 + $0x3c] sm:$0xf]
        %v1356 = vunpack.c.l.b16 %v1337
        %v1357 = vpack.c.b16 %v1135, %v1356
        %vm1358 = vcmask 1045504
        %v1359 = vrot.slane %v1357, 2
        %v1360 = vrot.slane %v1146, 2
        %v1361 = vsel %vm1358, %v1359, %v1360
        %v1362 = vrot.slane %v1147, 2
        %v1363 = vsel %vm1358, %v1360, %v1362
        %v1364 = vrot.slane %v1148, 2
        %v1365 = vsel %vm1358, %v1362, %v1364
        %v1366 = vrot.slane %v1149, 2
        %v1367 = vsel %vm1358, %v1364, %v1366
        %v1368 = vrot.slane %v1150, 2
        %v1369 = vsel %vm1358, %v1366, %v1368
        %v1391 = vunpack.c.l.b16 %v1339
        %v1392 = vunpack.c.l.b16 %v1340
        %v1393 = vunpack.c.l.b16 %v1341
        %v1394 = vunpack.c.l.b16 %v1342
        %v1395 = vunpack.c.l.b16 %v1343
        %v1396 = vunpack.c.l.b16 %v1344
        %v1397 = vunpack.c.l.b16 %v1345
        %v1398 = vunpack.c.l.b16 %v1346
        %v1399 = vunpack.c.l.b16 %v1347
        %v1400 = vunpack.c.l.b16 %v1348
        %v1401 = vunpack.c.l.b16 %v1349
        %v1402 = vunpack.c.l.b16 %v1350
        %v1403 = vunpack.c.l.b16 %v1351
        %v1404 = vunpack.c.l.b16 %v1352
        %v1405 = vunpack.c.l.b16 %v1353
        %v1406 = vunpack.c.l.b16 %v1354
        %v1407 = vpack.c.b16 %v1392, %v1391
        %v1408 = vpack.c.b16 %v1394, %v1393
        %v1409 = vpack.c.b16 %v1396, %v1395
        %v1410 = vpack.c.b16 %v1398, %v1397
        %v1411 = vpack.c.b16 %v1400, %v1399
        %v1412 = vpack.c.b16 %v1402, %v1401
        %v1413 = vpack.c.b16 %v1404, %v1403
        %v1414 = vpack.c.b16 %v1406, %v1405
        %1423 = vmatprep.subr.bf16.mxu0 0
        %1424 = vmatpush1.bf16.msra.mxu0 %v1407
        %1425 = vmatprep.subr.bf16.mxu0 0
        %1426 = vmatpush1.bf16.msra.mxu0 %v1408
        %1427 = vmatprep.subr.bf16.mxu0 0
        %1428 = vmatpush1.bf16.msra.mxu0 %v1409
        %1429 = vmatprep.subr.bf16.mxu0 0
        %1430 = vmatpush1.bf16.msra.mxu0 %v1410
        %1431 = vmatprep.subr.bf16.mxu0 0
        %1432 = vmatpush1.bf16.msra.mxu0 %v1411
        %1433 = vmatprep.subr.bf16.mxu0 0
        %1434 = vmatpush1.bf16.msra.mxu0 %v1412
        %1435 = vmatprep.subr.bf16.mxu0 0
        %1436 = vmatpush1.bf16.msra.mxu0 %v1413
        %1437 = vmatprep.subr.bf16.mxu0 0
        %1438 = vmatpush1.bf16.msra.mxu0 %v1414
        %1439 = vmatprep.subr.bf16.mxu0 0
        %1440 = vmatpush1.bf16.msra.mxu0 0
        %1441 = vmatprep.subr.bf16.mxu0 0
        %1442 = vmatpush1.bf16.msra.mxu0 0
        %1443 = vmatprep.subr.bf16.mxu0 0
        %1444 = vmatpush1.bf16.msra.mxu0 0
        %1445 = vmatprep.subr.bf16.mxu0 0
        %1446 = vmatpush1.bf16.msra.mxu0 0
        %1447 = vmatprep.subr.bf16.mxu0 0
        %1448 = vmatpush1.bf16.msra.mxu0 0
        %1449 = vmatprep.subr.bf16.mxu0 0
        %1450 = vmatpush1.bf16.msra.mxu0 0
        %1451 = vmatprep.subr.bf16.mxu0 0
        %1452 = vmatpush1.bf16.msra.mxu0 0
        %1453 = vmatprep.subr.bf16.mxu0 0
        %1454 = vmatpush1.bf16.msra.mxu0 0
        %1455 = vmatprep.mubr.bf16.mxu0 0
        %1456 = vmatmul.mubr.bf16.gmra.mrb[0].mxu0 %v1361
        %v1457 = vpop.f32.mrb[0].mxu0
        %v1458 = vadd.f32 0.0, %v1457
        %v1459 = vpop.f32.mrb[0].mxu0
        %v1460 = vpop.f32.mrb[0].mxu0
        %v1461 = vadd.f32 0.0, %v1460
        %v1462 = vpop.f32.mrb[0].mxu0
        %1463 = vmatprep.mubr.bf16.mxu0 0
        %1464 = vmatmul.mubr.bf16.gmra.mrb[0].mxu0 %v1363
        %v1465 = vpop.f32.mrb[0].mxu0
        %v1466 = vadd.f32 0.0, %v1465
        %v1467 = vpop.f32.mrb[0].mxu0
        %v1468 = vpop.f32.mrb[0].mxu0
        %v1469 = vadd.f32 0.0, %v1468
        %v1470 = vpop.f32.mrb[0].mxu0
        %1471 = vmatprep.mubr.bf16.mxu0 0
        %1472 = vmatmul.mubr.bf16.gmra.mrb[0].mxu0 %v1365
        %v1473 = vpop.f32.mrb[0].mxu0
        %v1474 = vadd.f32 0.0, %v1473
        %v1475 = vpop.f32.mrb[0].mxu0
        %v1476 = vpop.f32.mrb[0].mxu0
        %v1477 = vadd.f32 0.0, %v1476
        %v1478 = vpop.f32.mrb[0].mxu0
        %1479 = vmatprep.mubr.bf16.mxu0 0
        %1480 = vmatmul.mubr.bf16.gmra.mrb[0].mxu0 %v1367
        %v1481 = vpop.f32.mrb[0].mxu0
        %v1482 = vadd.f32 0.0, %v1481
        %v1483 = vpop.f32.mrb[0].mxu0
        %v1484 = vpop.f32.mrb[0].mxu0
        %v1485 = vadd.f32 0.0, %v1484
        %v1486 = vpop.f32.mrb[0].mxu0
        %1487 = vmatprep.mubr.bf16.mxu0 0
        %1488 = vmatmul.mubr.bf16.gmra.mrb[0].mxu0 %v1369
        %v1489 = vpop.f32.mrb[0].mxu0
        %v1490 = vadd.f32 0.0, %v1489
        %v1491 = vpop.f32.mrb[0].mxu0
        %v1492 = vpop.f32.mrb[0].mxu0
        %v1493 = vadd.f32 0.0, %v1492
        %v1494 = vpop.f32.mrb[0].mxu0
        %1495 = vdwg.mxu0
        %v1496 = vadd.f32 %v1327, %v1458
        %v1497 = vadd.f32 %v1328, %v1461
        %v1498 = vadd.f32 %v1329, %v1466
        %v1499 = vadd.f32 %v1330, %v1469
        %v1500 = vadd.f32 %v1331, %v1474
        %v1501 = vadd.f32 %v1332, %v1477
        %v1502 = vadd.f32 %v1333, %v1482
        %v1503 = vadd.f32 %v1334, %v1485
        %v1504 = vadd.f32 %v1335, %v1490
        %v1505 = vadd.f32 %v1336, %v1493
        %v1506 = vld [vmem:[%s318 + $0x8] sm:$0xc]
        %v1507 = vld [vmem:[%s318 + $0xc] sm:$0xf]
        %v1508 = vld [vmem:[%s318 + $0x10] sm:$0xf]
        %v1509 = vld [vmem:[%s318 + $0x14] sm:$0xf]
        %v1510 = vld [vmem:[%s318 + $0x18] sm:$0xf]
        %v1511 = vld [vmem:[%s318 + $0x1c] sm:$0xf]
        %v1512 = vld [vmem:[%s318 + $0x20] sm:$0xf]
        %v1513 = vld [vmem:[%s318 + $0x24] sm:$0xf]
        %v1514 = vld [vmem:[%s318 + $0x28] sm:$0xf]
        %v1515 = vld [vmem:[%s318 + $0x2c] sm:$0xf]
        %v1516 = vld [vmem:[%s318 + $0x30] sm:$0x1]
        %s1517 = scalar_lea.vmem %s326, 384 [#allocation3]
        %v1518 = vld [vmem:[%s1517] sm:$0xf]
        %v1519 = vld [vmem:[%s1517 + $0x4] sm:$0xf]
        %v1520 = vld [vmem:[%s1517 + $0x8] sm:$0xf]
        %v1521 = vld [vmem:[%s1517 + $0xc] sm:$0xf]
        %v1522 = vld [vmem:[%s1517 + $0x10] sm:$0xf]
        %v1523 = vld [vmem:[%s1517 + $0x14] sm:$0xf]
        %v1524 = vld [vmem:[%s1517 + $0x18] sm:$0xf]
        %v1525 = vld [vmem:[%s1517 + $0x1c] sm:$0xf]
        %v1526 = vld [vmem:[%s1517 + $0x20] sm:$0xf]
        %v1527 = vld [vmem:[%s1517 + $0x24] sm:$0xf]
        %v1528 = vld [vmem:[%s1517 + $0x28] sm:$0xf]
        %v1529 = vld [vmem:[%s1517 + $0x2c] sm:$0xf]
        %v1530 = vld [vmem:[%s1517 + $0x30] sm:$0xf]
        %v1531 = vld [vmem:[%s1517 + $0x34] sm:$0xf]
        %v1532 = vld [vmem:[%s1517 + $0x38] sm:$0xf]
        %v1533 = vld [vmem:[%s1517 + $0x3c] sm:$0xf]
        %v1545 = vunpack.c.l.b16 %v1506
        %v1546 = vunpack.c.l.b16 %v1507
        %v1547 = vunpack.c.l.b16 %v1508
        %v1548 = vunpack.c.l.b16 %v1509
        %v1549 = vunpack.c.l.b16 %v1510
        %v1550 = vunpack.c.l.b16 %v1511
        %v1551 = vunpack.c.l.b16 %v1512
        %v1552 = vunpack.c.l.b16 %v1513
        %v1553 = vunpack.c.l.b16 %v1514
        %v1554 = vunpack.c.l.b16 %v1515
        %v1555 = vunpack.c.l.b16 %v1516
        %v1556 = vpack.c.b16 %v1546, %v1545
        %v1557 = vpack.c.b16 %v1548, %v1547
        %v1558 = vpack.c.b16 %v1550, %v1549
        %v1559 = vpack.c.b16 %v1552, %v1551
        %v1560 = vpack.c.b16 %v1554, %v1553
        %v1561 = vpack.c.b16 %v1555, %v1555
        %v1562 = vrot.slane %v1556, 2
        %v1563 = vrot.slane %v1557, 2
        %v1564 = vsel %vm1358, %v1562, %v1563
        %v1565 = vrot.slane %v1558, 2
        %v1566 = vsel %vm1358, %v1563, %v1565
        %v1567 = vrot.slane %v1559, 2
        %v1568 = vsel %vm1358, %v1565, %v1567
        %v1569 = vrot.slane %v1560, 2
        %v1570 = vsel %vm1358, %v1567, %v1569
        %v1571 = vrot.slane %v1561, 2
        %v1572 = vsel %vm1358, %v1569, %v1571
        %v1594 = vunpack.c.l.b16 %v1518
        %v1595 = vunpack.c.l.b16 %v1519
        %v1596 = vunpack.c.l.b16 %v1520
        %v1597 = vunpack.c.l.b16 %v1521
        %v1598 = vunpack.c.l.b16 %v1522
        %v1599 = vunpack.c.l.b16 %v1523
        %v1600 = vunpack.c.l.b16 %v1524
        %v1601 = vunpack.c.l.b16 %v1525
        %v1602 = vunpack.c.l.b16 %v1526
        %v1603 = vunpack.c.l.b16 %v1527
        %v1604 = vunpack.c.l.b16 %v1528
        %v1605 = vunpack.c.l.b16 %v1529
        %v1606 = vunpack.c.l.b16 %v1530
        %v1607 = vunpack.c.l.b16 %v1531
        %v1608 = vunpack.c.l.b16 %v1532
        %v1609 = vunpack.c.l.b16 %v1533
        %v1610 = vpack.c.b16 %v1595, %v1594
        %v1611 = vpack.c.b16 %v1597, %v1596
        %v1612 = vpack.c.b16 %v1599, %v1598
        %v1613 = vpack.c.b16 %v1601, %v1600
        %v1614 = vpack.c.b16 %v1603, %v1602
        %v1615 = vpack.c.b16 %v1605, %v1604
        %v1616 = vpack.c.b16 %v1607, %v1606
        %v1617 = vpack.c.b16 %v1609, %v1608
        %1626 = vmatprep.subr.bf16.mxu0 0
        %1627 = vmatpush1.bf16.msra.mxu0 %v1610
        %1628 = vmatprep.subr.bf16.mxu0 0
        %1629 = vmatpush1.bf16.msra.mxu0 %v1611
        %1630 = vmatprep.subr.bf16.mxu0 0
        %1631 = vmatpush1.bf16.msra.mxu0 %v1612
        %1632 = vmatprep.subr.bf16.mxu0 0
        %1633 = vmatpush1.bf16.msra.mxu0 %v1613
        %1634 = vmatprep.subr.bf16.mxu0 0
        %1635 = vmatpush1.bf16.msra.mxu0 %v1614
        %1636 = vmatprep.subr.bf16.mxu0 0
        %1637 = vmatpush1.bf16.msra.mxu0 %v1615
        %1638 = vmatprep.subr.bf16.mxu0 0
        %1639 = vmatpush1.bf16.msra.mxu0 %v1616
        %1640 = vmatprep.subr.bf16.mxu0 0
        %1641 = vmatpush1.bf16.msra.mxu0 %v1617
        %1642 = vmatprep.subr.bf16.mxu0 0
        %1643 = vmatpush1.bf16.msra.mxu0 0
        %1644 = vmatprep.subr.bf16.mxu0 0
        %1645 = vmatpush1.bf16.msra.mxu0 0
        %1646 = vmatprep.subr.bf16.mxu0 0
        %1647 = vmatpush1.bf16.msra.mxu0 0
        %1648 = vmatprep.subr.bf16.mxu0 0
        %1649 = vmatpush1.bf16.msra.mxu0 0
        %1650 = vmatprep.subr.bf16.mxu0 0
        %1651 = vmatpush1.bf16.msra.mxu0 0
        %1652 = vmatprep.subr.bf16.mxu0 0
        %1653 = vmatpush1.bf16.msra.mxu0 0
        %1654 = vmatprep.subr.bf16.mxu0 0
        %1655 = vmatpush1.bf16.msra.mxu0 0
        %1656 = vmatprep.subr.bf16.mxu0 0
        %1657 = vmatpush1.bf16.msra.mxu0 0
        %1658 = vmatprep.mubr.bf16.mxu0 0
        %1659 = vmatmul.mubr.bf16.gmra.mrb[0].mxu0 %v1564
        %v1660 = vpop.f32.mrb[0].mxu0
        %v1661 = vadd.f32 0.0, %v1660
        %v1662 = vpop.f32.mrb[0].mxu0
        %v1663 = vpop.f32.mrb[0].mxu0
        %v1664 = vadd.f32 0.0, %v1663
        %v1665 = vpop.f32.mrb[0].mxu0
        %1666 = vmatprep.mubr.bf16.mxu0 0
        %1667 = vmatmul.mubr.bf16.gmra.mrb[0].mxu0 %v1566
        %v1668 = vpop.f32.mrb[0].mxu0
        %v1669 = vadd.f32 0.0, %v1668
        %v1670 = vpop.f32.mrb[0].mxu0
        %v1671 = vpop.f32.mrb[0].mxu0
        %v1672 = vadd.f32 0.0, %v1671
        %v1673 = vpop.f32.mrb[0].mxu0
        %1674 = vmatprep.mubr.bf16.mxu0 0
        %1675 = vmatmul.mubr.bf16.gmra.mrb[0].mxu0 %v1568
        %v1676 = vpop.f32.mrb[0].mxu0
        %v1677 = vadd.f32 0.0, %v1676
        %v1678 = vpop.f32.mrb[0].mxu0
        %v1679 = vpop.f32.mrb[0].mxu0
        %v1680 = vadd.f32 0.0, %v1679
        %v1681 = vpop.f32.mrb[0].mxu0
        %1682 = vmatprep.mubr.bf16.mxu0 0
        %1683 = vmatmul.mubr.bf16.gmra.mrb[0].mxu0 %v1570
        %v1684 = vpop.f32.mrb[0].mxu0
        %v1685 = vadd.f32 0.0, %v1684
        %v1686 = vpop.f32.mrb[0].mxu0
        %v1687 = vpop.f32.mrb[0].mxu0
        %v1688 = vadd.f32 0.0, %v1687
        %v1689 = vpop.f32.mrb[0].mxu0
        %1690 = vmatprep.mubr.bf16.mxu0 0
        %1691 = vmatmul.mubr.bf16.gmra.mrb[0].mxu0 %v1572
        %v1692 = vpop.f32.mrb[0].mxu0
        %v1693 = vadd.f32 0.0, %v1692
        %v1694 = vpop.f32.mrb[0].mxu0
        %v1695 = vpop.f32.mrb[0].mxu0
        %v1696 = vadd.f32 0.0, %v1695
        %v1697 = vpop.f32.mrb[0].mxu0
        %1698 = vdwg.mxu0
        %v1699 = vadd.f32 %v1496, %v1661
        %v1700 = vadd.f32 %v1497, %v1664
        %v1701 = vadd.f32 %v1498, %v1669
        %v1702 = vadd.f32 %v1499, %v1672
        %v1703 = vadd.f32 %v1500, %v1677
        %v1704 = vadd.f32 %v1501, %v1680
        %v1705 = vadd.f32 %v1502, %v1685
        %v1706 = vadd.f32 %v1503, %v1688
        %v1707 = vadd.f32 %v1504, %v1693
        %v1708 = vadd.f32 %v1505, %v1696
        %v1709 = vld [vmem:[%s318 + $0x30] sm:$0x3]
        %s1710 = scalar_lea.vmem %s326, 448 [#allocation3]
        %v1711 = vld [vmem:[%s1710] sm:$0xf]
        %v1712 = vld [vmem:[%s1710 + $0x4] sm:$0xf]
        %v1713 = vld [vmem:[%s1710 + $0x8] sm:$0xf]
        %v1714 = vld [vmem:[%s1710 + $0xc] sm:$0xf]
        %v1715 = vld [vmem:[%s1710 + $0x10] sm:$0xf]
        %v1716 = vld [vmem:[%s1710 + $0x14] sm:$0xf]
        %v1717 = vld [vmem:[%s1710 + $0x18] sm:$0xf]
        %v1718 = vld [vmem:[%s1710 + $0x1c] sm:$0xf]
        %v1719 = vld [vmem:[%s1710 + $0x20] sm:$0xf]
        %v1720 = vld [vmem:[%s1710 + $0x24] sm:$0xf]
        %v1721 = vld [vmem:[%s1710 + $0x28] sm:$0xf]
        %v1722 = vld [vmem:[%s1710 + $0x2c] sm:$0xf]
        %v1723 = vld [vmem:[%s1710 + $0x30] sm:$0xf]
        %v1724 = vld [vmem:[%s1710 + $0x34] sm:$0xf]
        %v1725 = vld [vmem:[%s1710 + $0x38] sm:$0xf]
        %v1726 = vld [vmem:[%s1710 + $0x3c] sm:$0xf]
        %v1728 = vunpack.c.l.b16 %v1709
        %v1729 = vpack.c.b16 %v1728, %v1728
        %vm1730 = vsmask.f32 5376
        %v1732 = vshrl.u32 %v1556, 16
        %v1734 = vrot.slane %v1732, 2
        %v1735 = vshll.u32 %v1556, 16
        %v1737 = vrot.slane %v1735, 3
        %v1738 = vor.u32 %v1734, %v1737
        %v1740 = vshrl.u32 %v1557, 16
        %v1742 = vrot.slane %v1740, 2
        %v1743 = vshll.u32 %v1557, 16
        %v1745 = vrot.slane %v1743, 3
        %v1746 = vor.u32 %v1742, %v1745
        %v1747 = vsel %vm1730, %v1738, %v1746
        %v1749 = vshrl.u32 %v1558, 16
        %v1751 = vrot.slane %v1749, 2
        %v1752 = vshll.u32 %v1558, 16
        %v1754 = vrot.slane %v1752, 3
        %v1755 = vor.u32 %v1751, %v1754
        %v1756 = vsel %vm1730, %v1746, %v1755
        %v1758 = vshrl.u32 %v1559, 16
        %v1760 = vrot.slane %v1758, 2
        %v1761 = vshll.u32 %v1559, 16
        %v1763 = vrot.slane %v1761, 3
        %v1764 = vor.u32 %v1760, %v1763
        %v1765 = vsel %vm1730, %v1755, %v1764
        %v1767 = vshrl.u32 %v1560, 16
        %v1769 = vrot.slane %v1767, 2
        %v1770 = vshll.u32 %v1560, 16
        %v1772 = vrot.slane %v1770, 3
        %v1773 = vor.u32 %v1769, %v1772
        %v1774 = vsel %vm1730, %v1764, %v1773
        %v1776 = vshrl.u32 %v1729, 16
        %v1778 = vrot.slane %v1776, 2
        %v1779 = vshll.u32 %v1729, 16
        %v1781 = vrot.slane %v1779, 3
        %v1782 = vor.u32 %v1778, %v1781
        %v1783 = vsel %vm1730, %v1773, %v1782
        %v1805 = vunpack.c.l.b16 %v1711
        %v1806 = vunpack.c.l.b16 %v1712
        %v1807 = vunpack.c.l.b16 %v1713
        %v1808 = vunpack.c.l.b16 %v1714
        %v1809 = vunpack.c.l.b16 %v1715
        %v1810 = vunpack.c.l.b16 %v1716
        %v1811 = vunpack.c.l.b16 %v1717
        %v1812 = vunpack.c.l.b16 %v1718
        %v1813 = vunpack.c.l.b16 %v1719
        %v1814 = vunpack.c.l.b16 %v1720
        %v1815 = vunpack.c.l.b16 %v1721
        %v1816 = vunpack.c.l.b16 %v1722
        %v1817 = vunpack.c.l.b16 %v1723
        %v1818 = vunpack.c.l.b16 %v1724
        %v1819 = vunpack.c.l.b16 %v1725
        %v1820 = vunpack.c.l.b16 %v1726
        %v1821 = vpack.c.b16 %v1806, %v1805
        %v1822 = vpack.c.b16 %v1808, %v1807
        %v1823 = vpack.c.b16 %v1810, %v1809
        %v1824 = vpack.c.b16 %v1812, %v1811
        %v1825 = vpack.c.b16 %v1814, %v1813
        %v1826 = vpack.c.b16 %v1816, %v1815
        %v1827 = vpack.c.b16 %v1818, %v1817
        %v1828 = vpack.c.b16 %v1820, %v1819
        %1837 = vmatprep.subr.bf16.mxu0 0
        %1838 = vmatpush1.bf16.msra.mxu0 %v1821
        %1839 = vmatprep.subr.bf16.mxu0 0
        %1840 = vmatpush1.bf16.msra.mxu0 %v1822
        %1841 = vmatprep.subr.bf16.mxu0 0
        %1842 = vmatpush1.bf16.msra.mxu0 %v1823
        %1843 = vmatprep.subr.bf16.mxu0 0
        %1844 = vmatpush1.bf16.msra.mxu0 %v1824
        %1845 = vmatprep.subr.bf16.mxu0 0
        %1846 = vmatpush1.bf16.msra.mxu0 %v1825
        %1847 = vmatprep.subr.bf16.mxu0 0
        %1848 = vmatpush1.bf16.msra.mxu0 %v1826
        %1849 = vmatprep.subr.bf16.mxu0 0
        %1850 = vmatpush1.bf16.msra.mxu0 %v1827
        %1851 = vmatprep.subr.bf16.mxu0 0
        %1852 = vmatpush1.bf16.msra.mxu0 %v1828
        %1853 = vmatprep.subr.bf16.mxu0 0
        %1854 = vmatpush1.bf16.msra.mxu0 0
        %1855 = vmatprep.subr.bf16.mxu0 0
        %1856 = vmatpush1.bf16.msra.mxu0 0
        %1857 = vmatprep.subr.bf16.mxu0 0
        %1858 = vmatpush1.bf16.msra.mxu0 0
        %1859 = vmatprep.subr.bf16.mxu0 0
        %1860 = vmatpush1.bf16.msra.mxu0 0
        %1861 = vmatprep.subr.bf16.mxu0 0
        %1862 = vmatpush1.bf16.msra.mxu0 0
        %1863 = vmatprep.subr.bf16.mxu0 0
        %1864 = vmatpush1.bf16.msra.mxu0 0
        %1865 = vmatprep.subr.bf16.mxu0 0
        %1866 = vmatpush1.bf16.msra.mxu0 0
        %1867 = vmatprep.subr.bf16.mxu0 0
        %1868 = vmatpush1.bf16.msra.mxu0 0
        %1869 = vmatprep.mubr.bf16.mxu0 0
        %1870 = vmatmul.mubr.bf16.gmra.mrb[0].mxu0 %v1747
        %v1871 = vpop.f32.mrb[0].mxu0
        %v1872 = vadd.f32 0.0, %v1871
        %v1873 = vpop.f32.mrb[0].mxu0
        %v1874 = vpop.f32.mrb[0].mxu0
        %v1875 = vadd.f32 0.0, %v1874
        %v1876 = vpop.f32.mrb[0].mxu0
        %1877 = vmatprep.mubr.bf16.mxu0 0
        %1878 = vmatmul.mubr.bf16.gmra.mrb[0].mxu0 %v1756
        %v1879 = vpop.f32.mrb[0].mxu0
        %v1880 = vadd.f32 0.0, %v1879
        %v1881 = vpop.f32.mrb[0].mxu0
        %v1882 = vpop.f32.mrb[0].mxu0
        %v1883 = vadd.f32 0.0, %v1882
        %v1884 = vpop.f32.mrb[0].mxu0
        %1885 = vmatprep.mubr.bf16.mxu0 0
        %1886 = vmatmul.mubr.bf16.gmra.mrb[0].mxu0 %v1765
        %v1887 = vpop.f32.mrb[0].mxu0
        %v1888 = vadd.f32 0.0, %v1887
        %v1889 = vpop.f32.mrb[0].mxu0
        %v1890 = vpop.f32.mrb[0].mxu0
        %v1891 = vadd.f32 0.0, %v1890
        %v1892 = vpop.f32.mrb[0].mxu0
        %1893 = vmatprep.mubr.bf16.mxu0 0
        %1894 = vmatmul.mubr.bf16.gmra.mrb[0].mxu0 %v1774
        %v1895 = vpop.f32.mrb[0].mxu0
        %v1896 = vadd.f32 0.0, %v1895
        %v1897 = vpop.f32.mrb[0].mxu0
        %v1898 = vpop.f32.mrb[0].mxu0
        %v1899 = vadd.f32 0.0, %v1898
        %v1900 = vpop.f32.mrb[0].mxu0
        %1901 = vmatprep.mubr.bf16.mxu0 0
        %1902 = vmatmul.mubr.bf16.gmra.mrb[0].mxu0 %v1783
        %v1903 = vpop.f32.mrb[0].mxu0
        %v1904 = vadd.f32 0.0, %v1903
        %v1905 = vpop.f32.mrb[0].mxu0
        %v1906 = vpop.f32.mrb[0].mxu0
        %v1907 = vadd.f32 0.0, %v1906
        %v1908 = vpop.f32.mrb[0].mxu0
        %1909 = vdwg.mxu0
        %v1910 = vadd.f32 %v1699, %v1872
        %v1911 = vadd.f32 %v1700, %v1875
        %v1912 = vadd.f32 %v1701, %v1880
        %v1913 = vadd.f32 %v1702, %v1883
        %v1914 = vadd.f32 %v1703, %v1888
        %v1915 = vadd.f32 %v1704, %v1891
        %v1916 = vadd.f32 %v1705, %v1896
        %v1917 = vadd.f32 %v1706, %v1899
        %v1918 = vadd.f32 %v1707, %v1904
        %v1919 = vadd.f32 %v1708, %v1907
        %v1920 = vld [vmem:[%s318 + $0x8] sm:$0x8]
        %s1921 = scalar_lea.vmem %s326, 512 [#allocation3]
        %v1922 = vld [vmem:[%s1921] sm:$0xf]
        %v1923 = vld [vmem:[%s1921 + $0x4] sm:$0xf]
        %v1924 = vld [vmem:[%s1921 + $0x8] sm:$0xf]
        %v1925 = vld [vmem:[%s1921 + $0xc] sm:$0xf]
        %v1926 = vld [vmem:[%s1921 + $0x10] sm:$0xf]
        %v1927 = vld [vmem:[%s1921 + $0x14] sm:$0xf]
        %v1928 = vld [vmem:[%s1921 + $0x18] sm:$0xf]
        %v1929 = vld [vmem:[%s1921 + $0x1c] sm:$0xf]
        %v1930 = vld [vmem:[%s1921 + $0x20] sm:$0xf]
        %v1931 = vld [vmem:[%s1921 + $0x24] sm:$0xf]
        %v1932 = vld [vmem:[%s1921 + $0x28] sm:$0xf]
        %v1933 = vld [vmem:[%s1921 + $0x2c] sm:$0xf]
        %v1934 = vld [vmem:[%s1921 + $0x30] sm:$0xf]
        %v1935 = vld [vmem:[%s1921 + $0x34] sm:$0xf]
        %v1936 = vld [vmem:[%s1921 + $0x38] sm:$0xf]
        %v1937 = vld [vmem:[%s1921 + $0x3c] sm:$0xf]
        %v1939 = vunpack.c.l.b16 %v1920
        %v1940 = vpack.c.b16 %v1546, %v1939
        %vm1941 = vcmask 1044480
        %v1942 = vrot.slane %v1940, 3
        %v1943 = vrot.slane %v1557, 3
        %v1944 = vsel %vm1941, %v1942, %v1943
        %v1945 = vrot.slane %v1558, 3
        %v1946 = vsel %vm1941, %v1943, %v1945
        %v1947 = vrot.slane %v1559, 3
        %v1948 = vsel %vm1941, %v1945, %v1947
        %v1949 = vrot.slane %v1560, 3
        %v1950 = vsel %vm1941, %v1947, %v1949
        %v1951 = vrot.slane %v1729, 3
        %v1952 = vsel %vm1941, %v1949, %v1951
        %v1974 = vunpack.c.l.b16 %v1922
        %v1975 = vunpack.c.l.b16 %v1923
        %v1976 = vunpack.c.l.b16 %v1924
        %v1977 = vunpack.c.l.b16 %v1925
        %v1978 = vunpack.c.l.b16 %v1926
        %v1979 = vunpack.c.l.b16 %v1927
        %v1980 = vunpack.c.l.b16 %v1928
        %v1981 = vunpack.c.l.b16 %v1929
        %v1982 = vunpack.c.l.b16 %v1930
        %v1983 = vunpack.c.l.b16 %v1931
        %v1984 = vunpack.c.l.b16 %v1932
        %v1985 = vunpack.c.l.b16 %v1933
        %v1986 = vunpack.c.l.b16 %v1934
        %v1987 = vunpack.c.l.b16 %v1935
        %v1988 = vunpack.c.l.b16 %v1936
        %v1989 = vunpack.c.l.b16 %v1937
        %v1990 = vpack.c.b16 %v1975, %v1974
        %v1991 = vpack.c.b16 %v1977, %v1976
        %v1992 = vpack.c.b16 %v1979, %v1978
        %v1993 = vpack.c.b16 %v1981, %v1980
        %v1994 = vpack.c.b16 %v1983, %v1982
        %v1995 = vpack.c.b16 %v1985, %v1984
        %v1996 = vpack.c.b16 %v1987, %v1986
        %v1997 = vpack.c.b16 %v1989, %v1988
        %2006 = vmatprep.subr.bf16.mxu0 0
        %2007 = vmatpush1.bf16.msra.mxu0 %v1990
        %2008 = vmatprep.subr.bf16.mxu0 0
        %2009 = vmatpush1.bf16.msra.mxu0 %v1991
        %2010 = vmatprep.subr.bf16.mxu0 0
        %2011 = vmatpush1.bf16.msra.mxu0 %v1992
        %2012 = vmatprep.subr.bf16.mxu0 0
        %2013 = vmatpush1.bf16.msra.mxu0 %v1993
        %2014 = vmatprep.subr.bf16.mxu0 0
        %2015 = vmatpush1.bf16.msra.mxu0 %v1994
        %2016 = vmatprep.subr.bf16.mxu0 0
        %2017 = vmatpush1.bf16.msra.mxu0 %v1995
        %2018 = vmatprep.subr.bf16.mxu0 0
        %2019 = vmatpush1.bf16.msra.mxu0 %v1996
        %2020 = vmatprep.subr.bf16.mxu0 0
        %2021 = vmatpush1.bf16.msra.mxu0 %v1997
        %2022 = vmatprep.subr.bf16.mxu0 0
        %2023 = vmatpush1.bf16.msra.mxu0 0
        %2024 = vmatprep.subr.bf16.mxu0 0
        %2025 = vmatpush1.bf16.msra.mxu0 0
        %2026 = vmatprep.subr.bf16.mxu0 0
        %2027 = vmatpush1.bf16.msra.mxu0 0
        %2028 = vmatprep.subr.bf16.mxu0 0
        %2029 = vmatpush1.bf16.msra.mxu0 0
        %2030 = vmatprep.subr.bf16.mxu0 0
        %2031 = vmatpush1.bf16.msra.mxu0 0
        %2032 = vmatprep.subr.bf16.mxu0 0
        %2033 = vmatpush1.bf16.msra.mxu0 0
        %2034 = vmatprep.subr.bf16.mxu0 0
        %2035 = vmatpush1.bf16.msra.mxu0 0
        %2036 = vmatprep.subr.bf16.mxu0 0
        %2037 = vmatpush1.bf16.msra.mxu0 0
        %2038 = vmatprep.mubr.bf16.mxu0 0
        %2039 = vmatmul.mubr.bf16.gmra.mrb[0].mxu0 %v1944
        %v2040 = vpop.f32.mrb[0].mxu0
        %v2041 = vadd.f32 0.0, %v2040
        %v2042 = vpop.f32.mrb[0].mxu0
        %v2043 = vpop.f32.mrb[0].mxu0
        %v2044 = vadd.f32 0.0, %v2043
        %v2045 = vpop.f32.mrb[0].mxu0
        %2046 = vmatprep.mubr.bf16.mxu0 0
        %2047 = vmatmul.mubr.bf16.gmra.mrb[0].mxu0 %v1946
        %v2048 = vpop.f32.mrb[0].mxu0
        %v2049 = vadd.f32 0.0, %v2048
        %v2050 = vpop.f32.mrb[0].mxu0
        %v2051 = vpop.f32.mrb[0].mxu0
        %v2052 = vadd.f32 0.0, %v2051
        %v2053 = vpop.f32.mrb[0].mxu0
        %2054 = vmatprep.mubr.bf16.mxu0 0
        %2055 = vmatmul.mubr.bf16.gmra.mrb[0].mxu0 %v1948
        %v2056 = vpop.f32.mrb[0].mxu0
        %v2057 = vadd.f32 0.0, %v2056
        %v2058 = vpop.f32.mrb[0].mxu0
        %v2059 = vpop.f32.mrb[0].mxu0
        %v2060 = vadd.f32 0.0, %v2059
        %v2061 = vpop.f32.mrb[0].mxu0
        %2062 = vmatprep.mubr.bf16.mxu0 0
        %2063 = vmatmul.mubr.bf16.gmra.mrb[0].mxu0 %v1950
        %v2064 = vpop.f32.mrb[0].mxu0
        %v2065 = vadd.f32 0.0, %v2064
        %v2066 = vpop.f32.mrb[0].mxu0
        %v2067 = vpop.f32.mrb[0].mxu0
        %v2068 = vadd.f32 0.0, %v2067
        %v2069 = vpop.f32.mrb[0].mxu0
        %2070 = vmatprep.mubr.bf16.mxu0 0
        %2071 = vmatmul.mubr.bf16.gmra.mrb[0].mxu0 %v1952
        %v2072 = vpop.f32.mrb[0].mxu0
        %v2073 = vadd.f32 0.0, %v2072
        %v2074 = vpop.f32.mrb[0].mxu0
        %v2075 = vpop.f32.mrb[0].mxu0
        %v2076 = vadd.f32 0.0, %v2075
        %v2077 = vpop.f32.mrb[0].mxu0
        %2078 = vdwg.mxu0
        %v2079 = vadd.f32 %v1910, %v2041
        %v2080 = vadd.f32 %v1911, %v2044
        %v2081 = vadd.f32 %v1912, %v2049
        %v2082 = vadd.f32 %v1913, %v2052
        %v2083 = vadd.f32 %v1914, %v2057
        %v2084 = vadd.f32 %v1915, %v2060
        %v2085 = vadd.f32 %v1916, %v2065
        %v2086 = vadd.f32 %v1917, %v2068
        %v2087 = vadd.f32 %v1918, %v2073
        %v2088 = vadd.f32 %v1919, %v2076
        %v2089 = vld [vmem:[%s362] sm:$0x1]
        %v2091 = vlaneseq
        %v2092 = vshrl.u32 %v2091, 7
        %v2093 = vsub.s32 0, %v2092
        %v2094 = vrot.slane %v2089, %v2093
        %v2096 = vmul.f32 %v2079, %v2094
        %v2097 = vmul.f32 %v2080, %v2094
        %v2098 = vmul.f32 %v2081, %v2094
        %v2099 = vmul.f32 %v2082, %v2094
        %v2100 = vmul.f32 %v2083, %v2094
        %v2101 = vmul.f32 %v2084, %v2094
        %v2102 = vmul.f32 %v2085, %v2094
        %v2103 = vmul.f32 %v2086, %v2094
        %v2104 = vmul.f32 %v2087, %v2094
        %v2105 = vmul.f32 %v2088, %v2094
        %v2106 = vld [vmem:[%s365] sm:$0x1]
        %v2108 = vlaneseq
        %v2109 = vshrl.u32 %v2108, 7
        %v2110 = vsub.s32 0, %v2109
        %v2111 = vrot.slane %v2106, %v2110
        %v2113 = vadd.f32 %v2096, %v2111
        %v2114 = vadd.f32 %v2097, %v2111
        %v2115 = vadd.f32 %v2098, %v2111
        %v2116 = vadd.f32 %v2099, %v2111
        %v2117 = vadd.f32 %v2100, %v2111
        %v2118 = vadd.f32 %v2101, %v2111
        %v2119 = vadd.f32 %v2102, %v2111
        %v2120 = vadd.f32 %v2103, %v2111
        %v2121 = vadd.f32 %v2104, %v2111
        %v2122 = vadd.f32 %v2105, %v2111
        %v2123 = vmax.f32 %v2113, 0.0
        %v2124 = vmax.f32 %v2114, 0.0
        %v2125 = vmax.f32 %v2115, 0.0
        %v2126 = vmax.f32 %v2116, 0.0
        %v2127 = vmax.f32 %v2117, 0.0
        %v2128 = vmax.f32 %v2118, 0.0
        %v2129 = vmax.f32 %v2119, 0.0
        %v2130 = vmax.f32 %v2120, 0.0
        %v2131 = vmax.f32 %v2121, 0.0
        %v2132 = vmax.f32 %v2122, 0.0
        %v2133 = vpack.c.bf16 %v2124, %v2123
        %v2134 = vpack.c.bf16 %v2126, %v2125
        %v2135 = vpack.c.bf16 %v2128, %v2127
        %v2136 = vpack.c.bf16 %v2130, %v2129
        %v2137 = vpack.c.bf16 %v2132, %v2131
        %v2143 = vunpack.c.l.b16 %v2133
        %v2144 = vunpack.c.h.b16 %v2133
        %v2145 = vunpack.c.l.b16 %v2134
        %v2146 = vunpack.c.h.b16 %v2134
        %v2147 = vunpack.c.l.b16 %v2135
        %v2148 = vunpack.c.h.b16 %v2135
        %v2149 = vunpack.c.l.b16 %v2136
        %v2150 = vunpack.c.h.b16 %v2136
        %v2151 = vunpack.c.l.b16 %v2137
        %v2152 = vunpack.c.h.b16 %v2137
        %v2153 = vpack.c.b16 %v2143, %v2143
        %v2154 = vpack.c.b16 %v2144, %v2144
        %v2155 = vpack.c.b16 %v2145, %v2145
        %v2156 = vpack.c.b16 %v2146, %v2146
        %v2157 = vpack.c.b16 %v2147, %v2147
        %v2158 = vpack.c.b16 %v2148, %v2148
        %v2159 = vpack.c.b16 %v2149, %v2149
        %v2160 = vpack.c.b16 %v2150, %v2150
        %v2161 = vpack.c.b16 %v2151, %v2151
        %v2162 = vpack.c.b16 %v2152, %v2152
        %2173 = vst [vmem:[%s359] sm:$0xf] %v2153
        %2174 = vst [vmem:[%s359 + $0x4] sm:$0xf] %v2154
        %2175 = vst [vmem:[%s359 + $0x8] sm:$0xf] %v2155
        %2176 = vst [vmem:[%s359 + $0xc] sm:$0xf] %v2156
        %2177 = vst [vmem:[%s359 + $0x10] sm:$0xf] %v2157
        %2178 = vst [vmem:[%s359 + $0x14] sm:$0xf] %v2158
        %2179 = vst [vmem:[%s359 + $0x18] sm:$0xf] %v2159
        %2180 = vst [vmem:[%s359 + $0x1c] sm:$0xf] %v2160
        %2181 = vst [vmem:[%s359 + $0x20] sm:$0xf] %v2161
        %2182 = vst [vmem:[%s359 + $0x24] sm:$0x7] %v2162
        %s2183 = sand.u32 %s146, 1
        %s2184 = sand.u32 %s146, 1
        %s2185 = smul.addr %s2184, 40
        %s2186 = scalar_lea.vmem [#allocation5], %s2185
        // Predicated region
        $region82: #{grouped_conv3x3_s1.1} parent=72 // pred_check
          %p2187 = pneg %p156
        $region83: #{grouped_conv3x3_s1.1} parent=72 // pred_check_branch
          %2189 = sbr.rel (%p2187) target = $region85
        $region84: #{grouped_conv3x3_s1.1} parent=72 // pred_region
          %s2190 = smul.addr %s22, 20
          %s2191 = sadd.s32 %s23, %s2190
          %s2192 = smul.addr %s2191, 4
          %s2193 = scalar_lea.vmem %s4, %s2192
          // Predicated region
          $region86: #{grouped_conv3x3_s1.1} parent=84 // pred_check
            _
          $region87: #{grouped_conv3x3_s1.1} parent=84 // pred_check_branch
            %2195 = sbr.rel (0) target = $region89
          $region88: #{grouped_conv3x3_s1.1} parent=84 // pred_region
            // Predicated region
            $region90: #{grouped_conv3x3_s1.1} parent=88 // pred_check
              _
            $region91: #{grouped_conv3x3_s1.1} parent=88 // pred_check_branch
              %2197 = sbr.rel target = $region93
            $region92: #{grouped_conv3x3_s1.1} parent=88 // pred_region
              // Predicated region
              $region105: #{grouped_conv3x3_s1.1} parent=92 // pred_check
                _
              $region106: #{grouped_conv3x3_s1.1} parent=92 // pred_check_branch
                %2230 = sbr.rel (0) target = $region108
              $region107: #{grouped_conv3x3_s1.1} parent=92 // pred_region
                loop: start=0, step=1, limit=1
                $region109: #{grouped_conv3x3_s1.1} parent=107 // loop_pre_header
                  _
                $region110: #{grouped_conv3x3_s1.1} parent=107 // loop_header
                  %s2232 = sphi 0, %s2236
                  %p2233 = scmp.ge.s32.totalorder %s2232, 1
                  %s2237 = sphi %s2186, %s2186
                  %s2238 = sphi %s2193, %s2193
                $region111: #{grouped_conv3x3_s1.1} parent=107 // loop_header_branch
                  %2235 = sbr.rel (%p2233) target = $region115
                $region112: #{grouped_conv3x3_s1.1} parent=107 // loop_body
                  _
                $region113: #{grouped_conv3x3_s1.1} parent=107 // loop_footer
                  %s2236 = sadd.s32 1, %s2232
                $region114: #{grouped_conv3x3_s1.1} parent=107 // loop_footer_branch
                  %2231 = sbr.rel target = $region110
                $region115: #{grouped_conv3x3_s1.1} parent=107 // loop_exit
                  _
                loop: start=0, step=1, limit=1
                $region116: #{grouped_conv3x3_s1.1} parent=107 // loop_pre_header
                  _
                $region117: #{grouped_conv3x3_s1.1} parent=107 // loop_header
                  %s2241 = sphi 0, %s2245
                  %p2242 = scmp.ge.s32.totalorder %s2241, 1
                  %s2246 = sphi %s2186, %s2186
                  %s2247 = sphi %s2193, %s2193
                $region118: #{grouped_conv3x3_s1.1} parent=107 // loop_header_branch
                  %2244 = sbr.rel (%p2242) target = $region122
                $region119: #{grouped_conv3x3_s1.1} parent=107 // loop_body
                  %v2248 = vld [vmem:[%s2246] sm:$0xf]
                  %2249 = vst [vmem:[%s2247] sm:$0xf] %v2248
                  %v2250 = vld [vmem:[%s2246 + $0x4] sm:$0xf]
                  %2251 = vst [vmem:[%s2247 + $0x8] sm:$0xf] %v2250
                  %v2252 = vld [vmem:[%s2246 + $0x8] sm:$0xf]
                  %2253 = vst [vmem:[%s2247 + $0x10] sm:$0xf] %v2252
                  %v2254 = vld [vmem:[%s2246 + $0xc] sm:$0xf]
                  %2255 = vst [vmem:[%s2247 + $0x18] sm:$0xf] %v2254
                  %v2256 = vld [vmem:[%s2246 + $0x10] sm:$0xf]
                  %2257 = vst [vmem:[%s2247 + $0x20] sm:$0xf] %v2256
                  %v2258 = vld [vmem:[%s2246 + $0x14] sm:$0xf]
                  %2259 = vst [vmem:[%s2247 + $0x28] sm:$0xf] %v2258
                  %v2260 = vld [vmem:[%s2246 + $0x18] sm:$0xf]
                  %2261 = vst [vmem:[%s2247 + $0x30] sm:$0xf] %v2260
                  %v2262 = vld [vmem:[%s2246 + $0x1c] sm:$0xf]
                  %2263 = vst [vmem:[%s2247 + $0x38] sm:$0xf] %v2262
                  %v2264 = vld [vmem:[%s2246 + $0x20] sm:$0xf]
                  %2265 = vst [vmem:[%s2247 + $0x40] sm:$0xf] %v2264
                  %v2266 = vld [vmem:[%s2246 + $0x24] sm:$0xf]
                  %2267 = vst [vmem:[%s2247 + $0x48] sm:$0xf] %v2266
                $region120: #{grouped_conv3x3_s1.1} parent=107 // loop_footer
                  %s2245 = sadd.s32 1, %s2241
                $region121: #{grouped_conv3x3_s1.1} parent=107 // loop_footer_branch
                  %2240 = sbr.rel target = $region117
                $region122: #{grouped_conv3x3_s1.1} parent=107 // loop_exit
                  _
              $region108: #{grouped_conv3x3_s1.1} parent=92 // pred_fallthru
                _
            $region93: #{grouped_conv3x3_s1.1} parent=88 // pred_fallthru
              _
            // Predicated region
            $region94: #{grouped_conv3x3_s1.1} parent=88 // pred_check
              _
            $region95: #{grouped_conv3x3_s1.1} parent=88 // pred_check_branch
              %2199 = sbr.rel (0) target = $region97
            $region96: #{grouped_conv3x3_s1.1} parent=88 // pred_region
              loop: start=0, step=1, limit=1
              $region98: #{grouped_conv3x3_s1.1} parent=96 // loop_pre_header
                _
              $region99: #{grouped_conv3x3_s1.1} parent=96 // loop_header
                %s2202 = sphi 0, %s2206
                %p2203 = scmp.ge.s32.totalorder %s2202, 1
                %s2207 = sphi %s2186, %s2186
                %s2208 = sphi %s2193, %s2193
              $region100: #{grouped_conv3x3_s1.1} parent=96 // loop_header_branch
                %2205 = sbr.rel (%p2203) target = $region104
              $region101: #{grouped_conv3x3_s1.1} parent=96 // loop_body
                %v2209 = vld [vmem:[%s2207] sm:$0xf]
                %2210 = vst [vmem:[%s2208] sm:$0xf] %v2209
                %v2211 = vld [vmem:[%s2207 + $0x4] sm:$0xf]
                %2212 = vst [vmem:[%s2208 + $0x8] sm:$0xf] %v2211
                %v2213 = vld [vmem:[%s2207 + $0x8] sm:$0xf]
                %2214 = vst [vmem:[%s2208 + $0x10] sm:$0xf] %v2213
                %v2215 = vld [vmem:[%s2207 + $0xc] sm:$0xf]
                %2216 = vst [vmem:[%s2208 + $0x18] sm:$0xf] %v2215
                %v2217 = vld [vmem:[%s2207 + $0x10] sm:$0xf]
                %2218 = vst [vmem:[%s2208 + $0x20] sm:$0xf] %v2217
                %v2219 = vld [vmem:[%s2207 + $0x14] sm:$0xf]
                %2220 = vst [vmem:[%s2208 + $0x28] sm:$0xf] %v2219
                %v2221 = vld [vmem:[%s2207 + $0x18] sm:$0xf]
                %2222 = vst [vmem:[%s2208 + $0x30] sm:$0xf] %v2221
                %v2223 = vld [vmem:[%s2207 + $0x1c] sm:$0xf]
                %2224 = vst [vmem:[%s2208 + $0x38] sm:$0xf] %v2223
                %v2225 = vld [vmem:[%s2207 + $0x20] sm:$0xf]
                %2226 = vst [vmem:[%s2208 + $0x40] sm:$0xf] %v2225
                %v2227 = vld [vmem:[%s2207 + $0x24] sm:$0xf]
                %2228 = vst [vmem:[%s2208 + $0x48] sm:$0xf] %v2227
              $region102: #{grouped_conv3x3_s1.1} parent=96 // loop_footer
                %s2206 = sadd.s32 1, %s2202
              $region103: #{grouped_conv3x3_s1.1} parent=96 // loop_footer_branch
                %2201 = sbr.rel target = $region99
              $region104: #{grouped_conv3x3_s1.1} parent=96 // loop_exit
                _
            $region97: #{grouped_conv3x3_s1.1} parent=88 // pred_fallthru
              _
          $region89: #{grouped_conv3x3_s1.1} parent=84 // pred_fallthru
            _
          %2268 = vnop
        $region85: #{grouped_conv3x3_s1.1} parent=72 // pred_fallthru
          _
      $region73: #{grouped_conv3x3_s1.1} parent=5 // pred_fallthru
        _
      %p2269 = scmp.le.s32.totalorder 2, %s13
      // Predicated region
      $region123: #{grouped_conv3x3_s1.1} parent=5 // pred_check
        %p2270 = pneg %p2269
      $region124: #{grouped_conv3x3_s1.1} parent=5 // pred_check_branch
        %2272 = sbr.rel (%p2270) target = $region126
      $region125: #{grouped_conv3x3_s1.1} parent=5 // pred_region
        %s2273 = ssub.s32 %s13, 2
        // Predicated region
        $region127: #{grouped_conv3x3_s1.1} parent=125 // pred_check
          %p2274 = pneg %p162
        $region128: #{grouped_conv3x3_s1.1} parent=125 // pred_check_branch
          %2276 = sbr.rel (%p2274) target = $region130
        $region129: #{grouped_conv3x3_s1.1} parent=125 // pred_region
          %s2277 = sand.u32 %s147, 1
          %s2278 = sand.u32 %s147, 1
          %s2279 = smul.addr %s2278, 40
          %s2280 = scalar_lea.vmem [#allocation5], %s2279
        $region130: #{grouped_conv3x3_s1.1} parent=125 // pred_fallthru
          _
      $region126: #{grouped_conv3x3_s1.1} parent=5 // pred_fallthru
        _
    $region6: #{grouped_conv3x3_s1.1} parent=1 // loop_footer
      %s17 = sadd.s32 1, %s13
    $region7: #{grouped_conv3x3_s1.1} parent=1 // loop_footer_branch
      %12 = sbr.rel target = $region3
    $region8: #{grouped_conv3x3_s1.1} parent=1 // loop_exit
      _
    %2281 = vsyncpa [#allocation4], 1
    %s2282 = scalar_lea.sflag [#allocation4], 1
    %2283 = vsyncpa %s2282, 1

</llo_original>
